<compile_context>
chip_gen: v6e
topology: v6e:2x2x1
jax: 0.10.0
libtpu: 0.0.40
codegen_flags: <defaults>
</compile_context>

<pallas_src>
import numpy as np

import jax
import jax.numpy as jnp
from jax import lax
from jax.experimental import pallas as pl
from jax.experimental.pallas import tpu as pltpu

GN_EPS = 1e-5  # PyTorch GroupNorm default eps


def _gelu(x):
    # TODO(synk): PyTorch nn.GELU() default is the exact erf GELU; the tanh approximation is
    # used because erf lowering inside Mosaic is not guaranteed (deviation ~1e-3).
    return 0.5 * x * (1.0 + jnp.tanh(0.7978845608028654 * (x + 0.044715 * x * x * x)))


# ----------------------------- Pallas kernel -----------------------------

def _make_encoder_kernel(meta):
    """meta[l]: dict with trace-time ints K, stride, L_out, pad_next for layer l."""
    n_layers = len(meta)

    def kernel(*refs):
        # refs = [x, (w, b, gamma, beta, pgrp) * n_layers, out, buf_0 .. buf_{n_layers-2}]
        x_ref = refs[0]
        o_ref = refs[1 + 5 * n_layers]
        bufs = refs[2 + 5 * n_layers:]

        src = x_ref                                   # (Lp0, C_in): zero-padded time axis
        for l, m in enumerate(meta):
            w_ref, b_ref, g_ref, be_ref, pg_ref = refs[1 + 5 * l: 6 + 5 * l]
            K, s, L_out = m["K"], m["stride"], m["L_out"]

            # --- Conv1d as K strided-tap matmuls: only the L_out stride-s valid output rows
            #     are ever computed (no full stride-1 conv, no selection matmul afterwards).
            acc = None
            for k in range(K):
                if s > 1:
                    xk = src[pl.ds(k, L_out, stride=s), :]        # rows k, k+s, ...
                else:
                    xk = src[pl.ds(k, L_out), :]
                part = jnp.dot(xk.astype(w_ref.dtype), w_ref[k],
                               preferred_element_type=jnp.float32)
                acc = part if acc is None else acc + part
            y = acc + b_ref[...]                                   # (L_out, C) f32
            # nn.Dropout: identity (inference semantics)

            # --- GroupNorm(C//2, C): batch is the grid axis, so stats are local here.
            #     Cross-sublane reduce + tiny (C, C) group pool (1/n baked in) + free
            #     (1, C) VPU broadcast.  All math stays f32 (v5e has no bf16 VPU path).
            col_sum = jnp.sum(y, axis=0, keepdims=True)                      # (1, C)
            mean_bc = jnp.dot(col_sum, pg_ref[...],
                              preferred_element_type=jnp.float32)            # (1, C)
            d = y - mean_bc                                                  # two-pass (stable)
            sq_sum = jnp.sum(d * d, axis=0, keepdims=True)
            var_bc = jnp.dot(sq_sum, pg_ref[...],
                             preferred_element_type=jnp.float32)             # (1, C)
            a = g_ref[...] * lax.rsqrt(var_bc + GN_EPS)
            z = _gelu(d * a + be_ref[...])                                   # (L_out, C)

            if l == n_layers - 1:
                # TODO(synk): C_out(<128) lanes -> lane-sparse (masked) final store; a
                # lane-dense (L/4, 4*C) slab would need an in-kernel sublane->lane relayout.
                o_ref[...] = z.astype(o_ref.dtype)
            else:
                # --- zero re-padding for the next layer: plain offset stores into the
                #     persistent VMEM scratch buffer (no dense selection matmul).
                nxt = bufs[l]
                p_next = m["pad_next"]
                if p_next > 0:
                    zpad = jnp.zeros((p_next, z.shape[1]), jnp.float32)
                    nxt[0:p_next, :] = zpad
                    nxt[p_next + L_out:p_next + L_out + p_next, :] = zpad
                nxt[p_next:p_next + L_out, :] = z
                src = nxt

    return kernel


# ----------------------------- trace-time structural constants -----------------------------

def _build_meta(T, layers):
    meta = []
    L_in = T
    n = len(layers)
    for i, lyr in enumerate(layers):
        K, s, p = lyr["K"], lyr["stride"], lyr["pad"]
        C = lyr["w"].shape[2]
        groups = max(C // 2, 1)
        cs = C // groups                               # channels per GroupNorm group
        L_out = (L_in + 2 * p - K) // s + 1
        # (C, C) group pool + broadcast with 1/n baked in; applied as a tiny matmul to the
        # (1, C) per-step channel sums.  Kept f32 (exact 1/n, negligible cost at CxC).
        pgrp = np.zeros((C, C), np.float32)
        inv_n = 1.0 / float(cs * L_out)
        for c in range(C):
            g0 = (c // cs) * cs
            pgrp[c, g0:g0 + cs] = inv_n
        pad_next = layers[i + 1]["pad"] if i + 1 < n else 0
        meta.append(dict(K=K, stride=s, L_out=L_out, pad_next=pad_next,
                         Lp_next=L_out + 2 * pad_next, pgrp=pgrp))
        L_in = L_out
    return meta


# ----------------------------- forward wrapper -----------------------------

def maeeg_convolution_forward(x, params, mxu_dtype=jnp.bfloat16):
    """x: (B, C_in, T) -> (B, L_out, C_out), matching MAEEGConvolution.forward."""
    B, C_in, T = x.shape
    layers = params["layers"]
    meta = _build_meta(T, layers)
    p0 = layers[0]["pad"]
    Lp0 = T + 2 * p0
    E = layers[-1]["w"].shape[2]
    L_final = meta[-1]["L_out"]

    # channels-last + zero-pad the time axis once in the wrapper; the kernel keeps the
    # activation zero-padded in VMEM between layers (never round-trips through HBM).
    h = jnp.transpose(x, (0, 2, 1))                          # (B, T, C_in)
    h = jnp.pad(h, ((0, 0), (p0, p0), (0, 0)))               # (B, Lp0, C_in)

    inputs = [h]
    in_specs = [pl.BlockSpec((None, Lp0, C_in), lambda b: (b, 0, 0))]
    for lyr, m in zip(layers, meta):
        consts = [lyr["w"].astype(mxu_dtype),                # (K, C_in, C) MXU operand dtype
                  lyr["b"], lyr["gamma"], lyr["beta"],       # (1, C) f32
                  jnp.asarray(m["pgrp"])]                    # (C, C) f32
        inputs += consts
        in_specs += [pl.BlockSpec(a.shape, lambda b, nd=a.ndim: (0,) * nd) for a in consts]

    scratch_shapes = [pltpu.VMEM((meta[i]["Lp_next"], layers[i]["w"].shape[2]), jnp.float32)
                      for i in range(len(layers) - 1)]

    # VMEM budget: per-step I/O blocks (double-buffered) + tiny constants + scratch buffers.
    def _nb(shape, itemsize):
        return int(np.prod(shape)) * itemsize
    est = 2 * _nb((Lp0, C_in), 4) + 2 * _nb((L_final, E), 4)
    est += 2 * sum(_nb(a.shape, a.dtype.itemsize) for a in inputs[1:])
    est += sum(_nb((meta[i]["Lp_next"], layers[i]["w"].shape[2]), 4)
               for i in range(len(layers) - 1))
    vmem_limit = int(min(64 << 20, max(32 << 20, 2 * est)))

    out = pl.pallas_call(
        _make_encoder_kernel(meta),
        out_shape=jax.ShapeDtypeStruct((B, L_final, E), jnp.float32),
        grid=(B,),                                       # one batch element per grid step
        in_specs=in_specs,
        out_specs=pl.BlockSpec((None, L_final, E), lambda b: (b, 0, 0)),
        scratch_shapes=scratch_shapes,
        compiler_params=pltpu.CompilerParams(
            dimension_semantics=("parallel",),           # v7x megacore: shard batch steps
            vmem_limit_bytes=vmem_limit),
    )(*inputs)
    return out


# ----------------------------- parameters -----------------------------

def init_params(key, cfg):
    C_in, C_out = cfg["input_channel"], cfg["output_channel"]
    ks, ds = cfg["kernel_size"], cfg["downsample_size"]
    if not isinstance(ks, (list, tuple)):
        ks = [ks]
    if not isinstance(ds, (list, tuple)):
        ds = [ds]
    assert len(ks) == len(ds)
    ks = [e if e % 2 else e + 1 for e in ks]             # same odd-kernel fixup as the module

    layers = []
    in_c = C_in
    keys = jax.random.split(key, 4 * len(ks))
    for i, (K, s) in enumerate(zip(ks, ds)):
        kw, kb, kg, kbe = keys[4 * i: 4 * i + 4]
        w = 0.1 * jax.random.normal(kw, (C_out, in_c, K), jnp.float32)   # PyTorch Conv1d layout
        b = 0.1 * jax.random.normal(kb, (C_out,), jnp.float32)
        gamma = 1.0 + 0.05 * jax.random.normal(kg, (C_out,), jnp.float32)
        beta = 0.05 * jax.random.normal(kbe, (C_out,), jnp.float32)
        layers.append(dict(
            w=jnp.transpose(w, (2, 1, 0)),               # (K, C_in, C_out), f32 master copy
            b=b.reshape(1, -1), gamma=gamma.reshape(1, -1), beta=beta.reshape(1, -1),
            K=K, stride=s, pad=K // 2))
        in_c = C_out
    return dict(layers=layers)


# ----------------------------- pure-JAX reference (for self-check) -----------------------------

def _reference_forward(x, params):
    h = x                                                # (B, C, T)
    for lyr in params["layers"]:
        w = jnp.transpose(lyr["w"], (2, 1, 0))           # (C_out, C_in, K)
        h = lax.conv_general_dilated(
            h, w, window_strides=(lyr["stride"],), padding=[(lyr["pad"], lyr["pad"])],
            dimension_numbers=("NCH", "OIH", "NCH"))
        h = h + lyr["b"].reshape(1, -1, 1)
        Bq, Cq, Lq = h.shape
        g = Cq // 2
        hg = h.reshape(Bq, g, (Cq // g) * Lq)
        mean = jnp.mean(hg, axis=-1, keepdims=True)
        var = jnp.mean((hg - mean) ** 2, axis=-1, keepdims=True)
        hg = (hg - mean) * lax.rsqrt(var + GN_EPS)
        h = hg.reshape(Bq, Cq, Lq) * lyr["gamma"].reshape(1, -1, 1) + lyr["beta"].reshape(1, -1, 1)
        h = _gelu(h)
    return jnp.transpose(h, (0, 2, 1))


# ----------------------------- main -----------------------------

if __name__ == "__main__":
    cfg = dict(input_channel=4, output_channel=32, downsample_size=[2, 2],
               kernel_size=[3, 3], dropout=0.1)          # Dropout is identity (inference)

    key = jax.random.PRNGKey(0)
    pkey, xkey = jax.random.split(key)
    params = init_params(pkey, cfg)

    B, T = 2, 16
    x = jax.random.normal(xkey, (B, cfg["input_channel"], T), dtype=jnp.float32)

    ref = _reference_forward(x, params)

    # Exact path: f32 MXU operands, tight tolerance (catches any structural bug).
    fwd_f32 = jax.jit(lambda xx: maeeg_convolution_forward(xx, params, mxu_dtype=jnp.float32))
    out_f32 = jax.block_until_ready(fwd_f32(x))
    # Conv1d(k=3, stride=2, pad=1) twice: T 16 -> 8 -> 4; module returns (B, L, C).
    assert out_f32.shape == (B, 4, cfg["output_channel"]), out_f32.shape
    assert bool(jnp.all(jnp.isfinite(out_f32)))
    assert bool(jnp.allclose(out_f32, ref, rtol=1e-3, atol=1e-3)), \
        float(jnp.max(jnp.abs(out_f32 - ref)))

    # Fast path: bf16 MXU operands with f32 accumulation -> loose tolerance.
    fwd_bf16 = jax.jit(lambda xx: maeeg_convolution_forward(xx, params, mxu_dtype=jnp.bfloat16))
    out_bf16 = jax.block_until_ready(fwd_bf16(x))
    assert out_bf16.shape == (B, 4, cfg["output_channel"]), out_bf16.shape
    assert bool(jnp.all(jnp.isfinite(out_bf16)))
    assert bool(jnp.allclose(out_bf16, ref, rtol=1e-1, atol=1e-1)), \
        float(jnp.max(jnp.abs(out_bf16 - ref)))

    print("KERNEL_OK")
</pallas_src>

<mosaic_0001>
module attributes {stable_mosaic.version = 11 : i64} {
  func.func @kernel(%arg0: i32, %arg1: memref<1x18x4xf32, #tpu.memory_space<vmem>>, %arg2: memref<3x4x32xf32, #tpu.memory_space<vmem>>, %arg3: memref<1x32xf32, #tpu.memory_space<vmem>>, %arg4: memref<1x32xf32, #tpu.memory_space<vmem>>, %arg5: memref<1x32xf32, #tpu.memory_space<vmem>>, %arg6: memref<32x32xf32, #tpu.memory_space<vmem>>, %arg7: memref<3x32x32xf32, #tpu.memory_space<vmem>>, %arg8: memref<1x32xf32, #tpu.memory_space<vmem>>, %arg9: memref<1x32xf32, #tpu.memory_space<vmem>>, %arg10: memref<1x32xf32, #tpu.memory_space<vmem>>, %arg11: memref<32x32xf32, #tpu.memory_space<vmem>>, %arg12: memref<1x4x32xf32, #tpu.memory_space<vmem>>, %arg13: memref<10x32xf32, #tpu.memory_space<vmem>>) attributes {dimension_semantics = [#tpu.dimension_semantics<parallel>], iteration_bounds = array<i64: 2>, scalar_prefetch = 0 : i64, scratch_operands = 1 : i64, tpu.core_type = #tpu.core_type<tc>, window_params = [{transform_indices = @transform_0, window_bounds = array<i64: 1, 18, 4>}, {pipeline_mode = #tpu.pipeline_mode<synchronous>, transform_indices = @transform_1, window_bounds = array<i64: 3, 4, 32>}, {pipeline_mode = #tpu.pipeline_mode<synchronous>, transform_indices = @transform_2, window_bounds = array<i64: 1, 32>}, {pipeline_mode = #tpu.pipeline_mode<synchronous>, transform_indices = @transform_3, window_bounds = array<i64: 1, 32>}, {pipeline_mode = #tpu.pipeline_mode<synchronous>, transform_indices = @transform_4, window_bounds = array<i64: 1, 32>}, {pipeline_mode = #tpu.pipeline_mode<synchronous>, transform_indices = @transform_5, window_bounds = array<i64: 32, 32>}, {pipeline_mode = #tpu.pipeline_mode<synchronous>, transform_indices = @transform_6, window_bounds = array<i64: 3, 32, 32>}, {pipeline_mode = #tpu.pipeline_mode<synchronous>, transform_indices = @transform_7, window_bounds = array<i64: 1, 32>}, {pipeline_mode = #tpu.pipeline_mode<synchronous>, transform_indices = @transform_8, window_bounds = array<i64: 1, 32>}, {pipeline_mode = #tpu.pipeline_mode<synchronous>, transform_indices = @transform_9, window_bounds = array<i64: 1, 32>}, {pipeline_mode = #tpu.pipeline_mode<synchronous>, transform_indices = @transform_10, window_bounds = array<i64: 32, 32>}, {transform_indices = @transform_11, window_bounds = array<i64: 1, 4, 32>}]} {
    %c0 = arith.constant 0 : index
    %c0_0 = arith.constant 0 : index
    %c0_1 = arith.constant 0 : index
    %0 = tpu.strided_load %arg1[%c0, %c0_0, %c0_1] {strides = array<i32: 1, 2, 1>} : memref<1x18x4xf32, #tpu.memory_space<vmem>>, vector<1x8x4xf32>
    %1 = vector.shape_cast %0 : vector<1x8x4xf32> to vector<8x4xf32>
    %c0_2 = arith.constant 0 : index
    %c0_3 = arith.constant 0 : index
    %c0_4 = arith.constant 0 : index
    %2 = vector.load %arg2[%c0_2, %c0_3, %c0_4] : memref<3x4x32xf32, #tpu.memory_space<vmem>>, vector<1x4x32xf32>
    %3 = vector.shape_cast %2 : vector<1x4x32xf32> to vector<4x32xf32>
    %cst = arith.constant dense<0.000000e+00> : vector<8x32xf32>
    %4 = tpu.matmul %1, %3, %cst {dimension_numbers = #tpu.dot_dimension_numbers<[1], [0], [0], [1], [0, 0, 1, 1], [], []>} : vector<8x4xf32>, vector<4x32xf32>, vector<8x32xf32> -> vector<8x32xf32>
    %c0_5 = arith.constant 0 : index
    %c1 = arith.constant 1 : index
    %c0_6 = arith.constant 0 : index
    %5 = tpu.strided_load %arg1[%c0_5, %c1, %c0_6] {strides = array<i32: 1, 2, 1>} : memref<1x18x4xf32, #tpu.memory_space<vmem>>, vector<1x8x4xf32>
    %6 = vector.shape_cast %5 : vector<1x8x4xf32> to vector<8x4xf32>
    %c1_7 = arith.constant 1 : index
    %c0_8 = arith.constant 0 : index
    %c0_9 = arith.constant 0 : index
    %7 = vector.load %arg2[%c1_7, %c0_8, %c0_9] : memref<3x4x32xf32, #tpu.memory_space<vmem>>, vector<1x4x32xf32>
    %8 = vector.shape_cast %7 : vector<1x4x32xf32> to vector<4x32xf32>
    %cst_10 = arith.constant dense<0.000000e+00> : vector<8x32xf32>
    %9 = tpu.matmul %6, %8, %cst_10 {dimension_numbers = #tpu.dot_dimension_numbers<[1], [0], [0], [1], [0, 0, 1, 1], [], []>} : vector<8x4xf32>, vector<4x32xf32>, vector<8x32xf32> -> vector<8x32xf32>
    %10 = arith.addf %4, %9 : vector<8x32xf32>
    %c0_11 = arith.constant 0 : index
    %c2 = arith.constant 2 : index
    %c0_12 = arith.constant 0 : index
    %11 = tpu.strided_load %arg1[%c0_11, %c2, %c0_12] {strides = array<i32: 1, 2, 1>} : memref<1x18x4xf32, #tpu.memory_space<vmem>>, vector<1x8x4xf32>
    %12 = vector.shape_cast %11 : vector<1x8x4xf32> to vector<8x4xf32>
    %c2_13 = arith.constant 2 : index
    %c0_14 = arith.constant 0 : index
    %c0_15 = arith.constant 0 : index
    %13 = vector.load %arg2[%c2_13, %c0_14, %c0_15] : memref<3x4x32xf32, #tpu.memory_space<vmem>>, vector<1x4x32xf32>
    %14 = vector.shape_cast %13 : vector<1x4x32xf32> to vector<4x32xf32>
    %cst_16 = arith.constant dense<0.000000e+00> : vector<8x32xf32>
    %15 = tpu.matmul %12, %14, %cst_16 {dimension_numbers = #tpu.dot_dimension_numbers<[1], [0], [0], [1], [0, 0, 1, 1], [], []>} : vector<8x4xf32>, vector<4x32xf32>, vector<8x32xf32> -> vector<8x32xf32>
    %16 = arith.addf %10, %15 : vector<8x32xf32>
    %c0_17 = arith.constant 0 : index
    %c0_18 = arith.constant 0 : index
    %17 = vector.load %arg3[%c0_17, %c0_18] : memref<1x32xf32, #tpu.memory_space<vmem>>, vector<1x32xf32>
    %18 = vector.broadcast %17 : vector<1x32xf32> to vector<8x32xf32>
    %19 = arith.addf %16, %18 : vector<8x32xf32>
    %cst_19 = arith.constant dense<0.000000e+00> : vector<32xf32>
    %20 = vector.multi_reduction <add>, %19, %cst_19 [0] : vector<8x32xf32> to vector<32xf32>
    %21 = vector.shape_cast %20 : vector<32xf32> to vector<1x32xf32>
    %c0_20 = arith.constant 0 : index
    %c0_21 = arith.constant 0 : index
    %22 = vector.load %arg6[%c0_20, %c0_21] : memref<32x32xf32, #tpu.memory_space<vmem>>, vector<32x32xf32>
    %cst_22 = arith.constant dense<0.000000e+00> : vector<1x32xf32>
    %23 = tpu.matmul %21, %22, %cst_22 {dimension_numbers = #tpu.dot_dimension_numbers<[1], [0], [0], [1], [0, 0, 1, 1], [], []>} : vector<1x32xf32>, vector<32x32xf32>, vector<1x32xf32> -> vector<1x32xf32>
    %24 = vector.broadcast %23 : vector<1x32xf32> to vector<8x32xf32>
    %25 = arith.subf %19, %24 : vector<8x32xf32>
    %26 = arith.mulf %25, %25 : vector<8x32xf32>
    %cst_23 = arith.constant dense<0.000000e+00> : vector<32xf32>
    %27 = vector.multi_reduction <add>, %26, %cst_23 [0] : vector<8x32xf32> to vector<32xf32>
    %28 = vector.shape_cast %27 : vector<32xf32> to vector<1x32xf32>
    %c0_24 = arith.constant 0 : index
    %c0_25 = arith.constant 0 : index
    %29 = vector.load %arg6[%c0_24, %c0_25] : memref<32x32xf32, #tpu.memory_space<vmem>>, vector<32x32xf32>
    %cst_26 = arith.constant dense<0.000000e+00> : vector<1x32xf32>
    %30 = tpu.matmul %28, %29, %cst_26 {dimension_numbers = #tpu.dot_dimension_numbers<[1], [0], [0], [1], [0, 0, 1, 1], [], []>} : vector<1x32xf32>, vector<32x32xf32>, vector<1x32xf32> -> vector<1x32xf32>
    %c0_27 = arith.constant 0 : index
    %c0_28 = arith.constant 0 : index
    %31 = vector.load %arg4[%c0_27, %c0_28] : memref<1x32xf32, #tpu.memory_space<vmem>>, vector<1x32xf32>
    %cst_29 = arith.constant 9.99999974E-6 : f32
    %32 = vector.broadcast %cst_29 : f32 to vector<1x32xf32>
    %33 = arith.addf %30, %32 : vector<1x32xf32>
    %34 = math.rsqrt %33 : vector<1x32xf32>
    %35 = arith.mulf %31, %34 : vector<1x32xf32>
    %36 = vector.broadcast %35 : vector<1x32xf32> to vector<8x32xf32>
    %37 = arith.mulf %25, %36 : vector<8x32xf32>
    %c0_30 = arith.constant 0 : index
    %c0_31 = arith.constant 0 : index
    %38 = vector.load %arg5[%c0_30, %c0_31] : memref<1x32xf32, #tpu.memory_space<vmem>>, vector<1x32xf32>
    %39 = vector.broadcast %38 : vector<1x32xf32> to vector<8x32xf32>
    %40 = arith.addf %37, %39 : vector<8x32xf32>
    %cst_32 = arith.constant 5.000000e-01 : f32
    %41 = vector.broadcast %cst_32 : f32 to vector<8x32xf32>
    %42 = arith.mulf %41, %40 : vector<8x32xf32>
    %cst_33 = arith.constant 4.471500e-02 : f32
    %43 = vector.broadcast %cst_33 : f32 to vector<8x32xf32>
    %44 = arith.mulf %43, %40 : vector<8x32xf32>
    %45 = arith.mulf %44, %40 : vector<8x32xf32>
    %46 = arith.mulf %45, %40 : vector<8x32xf32>
    %47 = arith.addf %40, %46 : vector<8x32xf32>
    %cst_34 = arith.constant 0.797884583 : f32
    %48 = vector.broadcast %cst_34 : f32 to vector<8x32xf32>
    %49 = arith.mulf %48, %47 : vector<8x32xf32>
    %50 = math.tanh %49 : vector<8x32xf32>
    %cst_35 = arith.constant 1.000000e+00 : f32
    %51 = vector.broadcast %cst_35 : f32 to vector<8x32xf32>
    %52 = arith.addf %51, %50 : vector<8x32xf32>
    %53 = arith.mulf %42, %52 : vector<8x32xf32>
    %cst_36 = arith.constant 0.000000e+00 : f32
    %54 = vector.broadcast %cst_36 : f32 to vector<1x32xf32>
    %c0_37 = arith.constant 0 : index
    %c0_38 = arith.constant 0 : index
    %55 = vector.load %arg13[%c0_37, %c0_38] : memref<10x32xf32, #tpu.memory_space<vmem>>, vector<1x32xf32>
    tpu.vector_store %arg13[%c0_37, %c0_38], %54 {strides = array<i32>} : memref<10x32xf32, #tpu.memory_space<vmem>>, vector<1x32xf32>,
    %c9 = arith.constant 9 : index
    %c0_39 = arith.constant 0 : index
    %56 = vector.load %arg13[%c9, %c0_39] : memref<10x32xf32, #tpu.memory_space<vmem>>, vector<1x32xf32>
    tpu.vector_store %arg13[%c9, %c0_39], %54 {strides = array<i32>} : memref<10x32xf32, #tpu.memory_space<vmem>>, vector<1x32xf32>,
    %c1_40 = arith.constant 1 : index
    %c0_41 = arith.constant 0 : index
    %57 = vector.load %arg13[%c1_40, %c0_41] : memref<10x32xf32, #tpu.memory_space<vmem>>, vector<8x32xf32>
    tpu.vector_store %arg13[%c1_40, %c0_41], %53 {strides = array<i32>} : memref<10x32xf32, #tpu.memory_space<vmem>>, vector<8x32xf32>,
    %c0_42 = arith.constant 0 : index
    %c0_43 = arith.constant 0 : index
    %58 = tpu.strided_load %arg13[%c0_42, %c0_43] {strides = array<i32: 2, 1>} : memref<10x32xf32, #tpu.memory_space<vmem>>, vector<4x32xf32>
    %c0_44 = arith.constant 0 : index
    %c0_45 = arith.constant 0 : index
    %c0_46 = arith.constant 0 : index
    %59 = vector.load %arg7[%c0_44, %c0_45, %c0_46] : memref<3x32x32xf32, #tpu.memory_space<vmem>>, vector<1x32x32xf32>
    %60 = vector.shape_cast %59 : vector<1x32x32xf32> to vector<32x32xf32>
    %cst_47 = arith.constant dense<0.000000e+00> : vector<4x32xf32>
    %61 = tpu.matmul %58, %60, %cst_47 {dimension_numbers = #tpu.dot_dimension_numbers<[1], [0], [0], [1], [0, 0, 1, 1], [], []>} : vector<4x32xf32>, vector<32x32xf32>, vector<4x32xf32> -> vector<4x32xf32>
    %c1_48 = arith.constant 1 : index
    %c0_49 = arith.constant 0 : index
    %62 = tpu.strided_load %arg13[%c1_48, %c0_49] {strides = array<i32: 2, 1>} : memref<10x32xf32, #tpu.memory_space<vmem>>, vector<4x32xf32>
    %c1_50 = arith.constant 1 : index
    %c0_51 = arith.constant 0 : index
    %c0_52 = arith.constant 0 : index
    %63 = vector.load %arg7[%c1_50, %c0_51, %c0_52] : memref<3x32x32xf32, #tpu.memory_space<vmem>>, vector<1x32x32xf32>
    %64 = vector.shape_cast %63 : vector<1x32x32xf32> to vector<32x32xf32>
    %cst_53 = arith.constant dense<0.000000e+00> : vector<4x32xf32>
    %65 = tpu.matmul %62, %64, %cst_53 {dimension_numbers = #tpu.dot_dimension_numbers<[1], [0], [0], [1], [0, 0, 1, 1], [], []>} : vector<4x32xf32>, vector<32x32xf32>, vector<4x32xf32> -> vector<4x32xf32>
    %66 = arith.addf %61, %65 : vector<4x32xf32>
    %c2_54 = arith.constant 2 : index
    %c0_55 = arith.constant 0 : index
    %67 = tpu.strided_load %arg13[%c2_54, %c0_55] {strides = array<i32: 2, 1>} : memref<10x32xf32, #tpu.memory_space<vmem>>, vector<4x32xf32>
    %c2_56 = arith.constant 2 : index
    %c0_57 = arith.constant 0 : index
    %c0_58 = arith.constant 0 : index
    %68 = vector.load %arg7[%c2_56, %c0_57, %c0_58] : memref<3x32x32xf32, #tpu.memory_space<vmem>>, vector<1x32x32xf32>
    %69 = vector.shape_cast %68 : vector<1x32x32xf32> to vector<32x32xf32>
    %cst_59 = arith.constant dense<0.000000e+00> : vector<4x32xf32>
    %70 = tpu.matmul %67, %69, %cst_59 {dimension_numbers = #tpu.dot_dimension_numbers<[1], [0], [0], [1], [0, 0, 1, 1], [], []>} : vector<4x32xf32>, vector<32x32xf32>, vector<4x32xf32> -> vector<4x32xf32>
    %71 = arith.addf %66, %70 : vector<4x32xf32>
    %c0_60 = arith.constant 0 : index
    %c0_61 = arith.constant 0 : index
    %72 = vector.load %arg8[%c0_60, %c0_61] : memref<1x32xf32, #tpu.memory_space<vmem>>, vector<1x32xf32>
    %73 = vector.broadcast %72 : vector<1x32xf32> to vector<4x32xf32>
    %74 = arith.addf %71, %73 : vector<4x32xf32>
    %cst_62 = arith.constant dense<0.000000e+00> : vector<32xf32>
    %75 = vector.multi_reduction <add>, %74, %cst_62 [0] : vector<4x32xf32> to vector<32xf32>
    %76 = vector.shape_cast %75 : vector<32xf32> to vector<1x32xf32>
    %c0_63 = arith.constant 0 : index
    %c0_64 = arith.constant 0 : index
    %77 = vector.load %arg11[%c0_63, %c0_64] : memref<32x32xf32, #tpu.memory_space<vmem>>, vector<32x32xf32>
    %cst_65 = arith.constant dense<0.000000e+00> : vector<1x32xf32>
    %78 = tpu.matmul %76, %77, %cst_65 {dimension_numbers = #tpu.dot_dimension_numbers<[1], [0], [0], [1], [0, 0, 1, 1], [], []>} : vector<1x32xf32>, vector<32x32xf32>, vector<1x32xf32> -> vector<1x32xf32>
    %79 = vector.broadcast %78 : vector<1x32xf32> to vector<4x32xf32>
    %80 = arith.subf %74, %79 : vector<4x32xf32>
    %81 = arith.mulf %80, %80 : vector<4x32xf32>
    %cst_66 = arith.constant dense<0.000000e+00> : vector<32xf32>
    %82 = vector.multi_reduction <add>, %81, %cst_66 [0] : vector<4x32xf32> to vector<32xf32>
    %83 = vector.shape_cast %82 : vector<32xf32> to vector<1x32xf32>
    %c0_67 = arith.constant 0 : index
    %c0_68 = arith.constant 0 : index
    %84 = vector.load %arg11[%c0_67, %c0_68] : memref<32x32xf32, #tpu.memory_space<vmem>>, vector<32x32xf32>
    %cst_69 = arith.constant dense<0.000000e+00> : vector<1x32xf32>
    %85 = tpu.matmul %83, %84, %cst_69 {dimension_numbers = #tpu.dot_dimension_numbers<[1], [0], [0], [1], [0, 0, 1, 1], [], []>} : vector<1x32xf32>, vector<32x32xf32>, vector<1x32xf32> -> vector<1x32xf32>
    %c0_70 = arith.constant 0 : index
    %c0_71 = arith.constant 0 : index
    %86 = vector.load %arg9[%c0_70, %c0_71] : memref<1x32xf32, #tpu.memory_space<vmem>>, vector<1x32xf32>
    %cst_72 = arith.constant 9.99999974E-6 : f32
    %87 = vector.broadcast %cst_72 : f32 to vector<1x32xf32>
    %88 = arith.addf %85, %87 : vector<1x32xf32>
    %89 = math.rsqrt %88 : vector<1x32xf32>
    %90 = arith.mulf %86, %89 : vector<1x32xf32>
    %91 = vector.broadcast %90 : vector<1x32xf32> to vector<4x32xf32>
    %92 = arith.mulf %80, %91 : vector<4x32xf32>
    %c0_73 = arith.constant 0 : index
    %c0_74 = arith.constant 0 : index
    %93 = vector.load %arg10[%c0_73, %c0_74] : memref<1x32xf32, #tpu.memory_space<vmem>>, vector<1x32xf32>
    %94 = vector.broadcast %93 : vector<1x32xf32> to vector<4x32xf32>
    %95 = arith.addf %92, %94 : vector<4x32xf32>
    %cst_75 = arith.constant 5.000000e-01 : f32
    %96 = vector.broadcast %cst_75 : f32 to vector<4x32xf32>
    %97 = arith.mulf %96, %95 : vector<4x32xf32>
    %cst_76 = arith.constant 4.471500e-02 : f32
    %98 = vector.broadcast %cst_76 : f32 to vector<4x32xf32>
    %99 = arith.mulf %98, %95 : vector<4x32xf32>
    %100 = arith.mulf %99, %95 : vector<4x32xf32>
    %101 = arith.mulf %100, %95 : vector<4x32xf32>
    %102 = arith.addf %95, %101 : vector<4x32xf32>
    %cst_77 = arith.constant 0.797884583 : f32
    %103 = vector.broadcast %cst_77 : f32 to vector<4x32xf32>
    %104 = arith.mulf %103, %102 : vector<4x32xf32>
    %105 = math.tanh %104 : vector<4x32xf32>
    %cst_78 = arith.constant 1.000000e+00 : f32
    %106 = vector.broadcast %cst_78 : f32 to vector<4x32xf32>
    %107 = arith.addf %106, %105 : vector<4x32xf32>
    %108 = arith.mulf %97, %107 : vector<4x32xf32>
    %c0_79 = arith.constant 0 : index
    %c0_80 = arith.constant 0 : index
    %c0_81 = arith.constant 0 : index
    %109 = vector.load %arg12[%c0_79, %c0_80, %c0_81] : memref<1x4x32xf32, #tpu.memory_space<vmem>>, vector<1x4x32xf32>
    %110 = vector.shape_cast %109 : vector<1x4x32xf32> to vector<4x32xf32>
    %111 = vector.shape_cast %108 : vector<4x32xf32> to vector<1x4x32xf32>
    tpu.vector_store %arg12[%c0_79, %c0_80, %c0_81], %111 {strides = array<i32>} : memref<1x4x32xf32, #tpu.memory_space<vmem>>, vector<1x4x32xf32>,
    return
  }
  func.func @transform_0(%arg0: i32) -> (i32, i32, i32) {
    %c0_i32 = arith.constant 0 : i32
    %c0_i32_0 = arith.constant 0 : i32
    %c0_i32_1 = arith.constant 0 : i32
    return %arg0, %c0_i32, %c0_i32_0 : i32, i32, i32
  }
  func.func @transform_1(%arg0: i32) -> (i32, i32, i32) {
    %c0_i32 = arith.constant 0 : i32
    %c0_i32_0 = arith.constant 0 : i32
    %c0_i32_1 = arith.constant 0 : i32
    %c0_i32_2 = arith.constant 0 : i32
    return %c0_i32, %c0_i32_0, %c0_i32_1 : i32, i32, i32
  }
  func.func @transform_2(%arg0: i32) -> (i32, i32) {
    %c0_i32 = arith.constant 0 : i32
    %c0_i32_0 = arith.constant 0 : i32
    %c0_i32_1 = arith.constant 0 : i32
    return %c0_i32, %c0_i32_0 : i32, i32
  }
  func.func @transform_3(%arg0: i32) -> (i32, i32) {
    %c0_i32 = arith.constant 0 : i32
    %c0_i32_0 = arith.constant 0 : i32
    %c0_i32_1 = arith.constant 0 : i32
    return %c0_i32, %c0_i32_0 : i32, i32
  }
  func.func @transform_4(%arg0: i32) -> (i32, i32) {
    %c0_i32 = arith.constant 0 : i32
    %c0_i32_0 = arith.constant 0 : i32
    %c0_i32_1 = arith.constant 0 : i32
    return %c0_i32, %c0_i32_0 : i32, i32
  }
  func.func @transform_5(%arg0: i32) -> (i32, i32) {
    %c0_i32 = arith.constant 0 : i32
    %c0_i32_0 = arith.constant 0 : i32
    %c0_i32_1 = arith.constant 0 : i32
    return %c0_i32, %c0_i32_0 : i32, i32
  }
  func.func @transform_6(%arg0: i32) -> (i32, i32, i32) {
    %c0_i32 = arith.constant 0 : i32
    %c0_i32_0 = arith.constant 0 : i32
    %c0_i32_1 = arith.constant 0 : i32
    %c0_i32_2 = arith.constant 0 : i32
    return %c0_i32, %c0_i32_0, %c0_i32_1 : i32, i32, i32
  }
  func.func @transform_7(%arg0: i32) -> (i32, i32) {
    %c0_i32 = arith.constant 0 : i32
    %c0_i32_0 = arith.constant 0 : i32
    %c0_i32_1 = arith.constant 0 : i32
    return %c0_i32, %c0_i32_0 : i32, i32
  }
  func.func @transform_8(%arg0: i32) -> (i32, i32) {
    %c0_i32 = arith.constant 0 : i32
    %c0_i32_0 = arith.constant 0 : i32
    %c0_i32_1 = arith.constant 0 : i32
    return %c0_i32, %c0_i32_0 : i32, i32
  }
  func.func @transform_9(%arg0: i32) -> (i32, i32) {
    %c0_i32 = arith.constant 0 : i32
    %c0_i32_0 = arith.constant 0 : i32
    %c0_i32_1 = arith.constant 0 : i32
    return %c0_i32, %c0_i32_0 : i32, i32
  }
  func.func @transform_10(%arg0: i32) -> (i32, i32) {
    %c0_i32 = arith.constant 0 : i32
    %c0_i32_0 = arith.constant 0 : i32
    %c0_i32_1 = arith.constant 0 : i32
    return %c0_i32, %c0_i32_0 : i32, i32
  }
  func.func @transform_11(%arg0: i32) -> (i32, i32, i32) {
    %c0_i32 = arith.constant 0 : i32
    %c0_i32_0 = arith.constant 0 : i32
    %c0_i32_1 = arith.constant 0 : i32
    return %arg0, %c0_i32, %c0_i32_0 : i32, i32, i32
  }
}

</mosaic_0001>

<llo_original>
// kernel: _lambda_.1
$region0: #{_lambda_.1}
  #allocation0 [shape = 'u32[]', space=smem, size = 0x4, offset = 0x4, fixed_abs, tag = 'smem constant byte address 0x4 - core index']
  #allocation1 [shape = 'u32[144,128]{1,0:T(1,128)}', space=vmem, size = 0x12000, scoped, tag = 'internal scratch']
  #allocation2 [shape = 'f32[10,32]{1,0:T(8,128)}', space=vmem, size = 0x2000, scoped, tag = 'scratch operand']
  %s0 = inlined_call_operand.vmem [shape: f32[2,18,4], index: 0, kind: input, shape index: {}]
  %s1 = inlined_call_operand.hbm [shape: f32[3,4,32], index: 1, kind: input, shape index: {}]
  %s2 = inlined_call_operand.vmem [shape: f32[1,32], index: 2, kind: input, shape index: {}]
  %s3 = inlined_call_operand.vmem [shape: f32[1,32], index: 3, kind: input, shape index: {}]
  %s4 = inlined_call_operand.vmem [shape: f32[1,32], index: 4, kind: input, shape index: {}]
  %s5 = inlined_call_operand.hbm [shape: f32[32,32], index: 5, kind: input, shape index: {}]
  %s6 = inlined_call_operand.vmem [shape: f32[3,32,32], index: 6, kind: input, shape index: {}]
  %s7 = inlined_call_operand.vmem [shape: f32[1,32], index: 7, kind: input, shape index: {}]
  %s8 = inlined_call_operand.vmem [shape: f32[1,32], index: 8, kind: input, shape index: {}]
  %s9 = inlined_call_operand.vmem [shape: f32[1,32], index: 9, kind: input, shape index: {}]
  %s10 = inlined_call_operand.vmem [shape: f32[32,32], index: 10, kind: input, shape index: {}]
  %s11 = inlined_call_operand.hbm [shape: f32[2,4,32], index: 11, kind: output, shape index: {}]
  %s12 = sld [smem:[#allocation0]]
  $region85: #{_lambda_.1} parent=0
    _
  %s14 = ssub.s32 1, %s12
  %s15 = scalar_select 0, %s14, %s12
  $region1: #{_lambda_.1} parent=0
    #allocation3 [shape = 'u8[6144]{0}', space=vmem, size = 0x1800, scoped, tag = 'input window, operand 1, single buffered']
    #allocation4 [shape = 's32[2]{0}', space=sflag, size = 0x8, scoped, tag = 'scoped memory for _lambda_.1']
    #allocation5 [shape = 's32[2]{0}', space=sflag, size = 0x8, scoped, tag = 'scoped memory for _lambda_.1']
    #allocation6 [shape = 'u8[16384]{0}', space=vmem, size = 0x4000, scoped, tag = 'input window, operand 5, single buffered']
    #allocation7 [shape = 's32[1]{0}', space=sflag, size = 0x4, scoped, tag = 'scoped memory for _lambda_.1']
    #allocation8 [shape = 'u8[4096]{0}', space=vmem, size = 0x1000, scoped, tag = 'output window, operand 0']
    %16 = vsyncpa [#allocation4], 0
    %17 = vsyncpa [#allocation7], 0
    %18 = vsyncpa [#allocation5], 0
    %s19 = scalar_lea.sflag [#allocation5], 1
    %20 = vsyncpa %s19, 0
    loop: start=0, step=1, limit=4
    $region2: #{_lambda_.1} parent=1 // loop_pre_header
      _
    $region3: #{_lambda_.1} parent=1 // loop_header
      %s22 = sphi 0, %s26
      %p23 = scmp.ge.s32.totalorder %s22, 4
      %s32 = sphi 0, %s34
      %s35 = sphi 0, %s32
      %s36 = sphi 0, %s35
      %s52 = sphi 0, %s36
      %s56 = sphi 0, %s56
      %s58 = sphi 0, %s56
      %s59 = sphi 0, %s58
      %s73 = sphi 0, %s59
      %s77 = sphi 0, %s77
      %s79 = sphi 0, %s77
      %s80 = sphi 0, %s79
      %s94 = sphi 0, %s80
      %s98 = sphi 0, %s98
      %s100 = sphi 0, %s98
      %s101 = sphi 0, %s100
      %s115 = sphi 0, %s101
      %s119 = sphi 0, %s119
      %s121 = sphi 0, %s119
      %s122 = sphi 0, %s121
      %s136 = sphi 0, %s122
      %s140 = sphi 0, %s140
      %s142 = sphi 0, %s140
      %s143 = sphi 0, %s142
      %s157 = sphi 0, %s143
      %s161 = sphi 0, %s161
      %s163 = sphi 0, %s161
      %s164 = sphi 0, %s163
      %s178 = sphi 0, %s164
      %s182 = sphi 0, %s182
      %s184 = sphi 0, %s182
      %s185 = sphi 0, %s184
      %s199 = sphi 0, %s185
      %s203 = sphi 0, %s203
      %s205 = sphi 0, %s203
      %s206 = sphi 0, %s205
      %s220 = sphi 0, %s206
      %s224 = sphi 0, %s224
      %s226 = sphi 0, %s224
      %s227 = sphi 0, %s226
      %s241 = sphi 0, %s227
      %s245 = sphi 0, %s245
      %s247 = sphi 0, %s245
      %s248 = sphi 0, %s247
      %s262 = sphi 0, %s248
      %s268 = sphi 0, %s270
      %s271 = sphi 0, %s268
      %s272 = sphi 0, %s271
      %s288 = sphi 0, %s272
    $region4: #{_lambda_.1} parent=1 // loop_header_branch
      %25 = sbr.rel (%p23) target = $region8
    $region5: #{_lambda_.1} parent=1 // loop_body
      %s27 = ssub.s32 %s22, 1
      %s28 = ssub.s32 %s22, 2
      %s29 = sadd.s32 %s22, 1
      %s30 = ssub.s32 %s22, %s29
      %p31 = scmp.eq.s32.totalorder %s30, 0
      %s33 = sadd.s32 %s32, 1
      %s34 = scalar_select %p31, %s32, %s33
      %p37 = pneg %p31
      %p38 = scmp.eq.s32.totalorder %s22, 1
      %p39 = por %p37, %p38
      %p40 = scmp.ne.s32.totalorder %s32, %s35
      %p41 = scmp.eq.s32.totalorder %s22, 0
      %p42 = por %p40, %p41
      %p43 = scmp.ne.s32.totalorder %s32, %s35
      %p44 = scmp.eq.s32.totalorder %s27, 1
      %p45 = por %p43, %p44
      %p46 = scmp.ne.s32.totalorder %s35, %s36
      %p47 = scmp.eq.s32.totalorder %s27, 0
      %p48 = por %p46, %p47
      %p49 = scmp.ne.s32.totalorder %s35, %s36
      %p50 = scmp.eq.s32.totalorder %s28, 1
      %p51 = por %p49, %p50
      %p53 = scmp.ne.s32.totalorder %s36, %s52
      %p54 = scmp.eq.s32.totalorder %s28, 0
      %p55 = por %p53, %p54
      %s57 = sadd.s32 %s56, 1
      %p60 = scmp.eq.s32.totalorder %s22, 1
      %p61 = scmp.ne.s32.totalorder %s56, %s58
      %p62 = scmp.eq.s32.totalorder %s22, 0
      %p63 = por %p61, %p62
      %p64 = scmp.ne.s32.totalorder %s56, %s58
      %p65 = scmp.eq.s32.totalorder %s27, 1
      %p66 = por %p64, %p65
      %p67 = scmp.ne.s32.totalorder %s58, %s59
      %p68 = scmp.eq.s32.totalorder %s27, 0
      %p69 = por %p67, %p68
      %p70 = scmp.ne.s32.totalorder %s58, %s59
      %p71 = scmp.eq.s32.totalorder %s28, 1
      %p72 = por %p70, %p71
      %p74 = scmp.ne.s32.totalorder %s59, %s73
      %p75 = scmp.eq.s32.totalorder %s28, 0
      %p76 = por %p74, %p75
      %s78 = sadd.s32 %s77, 1
      %p81 = scmp.eq.s32.totalorder %s22, 1
      %p82 = scmp.ne.s32.totalorder %s77, %s79
      %p83 = scmp.eq.s32.totalorder %s22, 0
      %p84 = por %p82, %p83
      %p85 = scmp.ne.s32.totalorder %s77, %s79
      %p86 = scmp.eq.s32.totalorder %s27, 1
      %p87 = por %p85, %p86
      %p88 = scmp.ne.s32.totalorder %s79, %s80
      %p89 = scmp.eq.s32.totalorder %s27, 0
      %p90 = por %p88, %p89
      %p91 = scmp.ne.s32.totalorder %s79, %s80
      %p92 = scmp.eq.s32.totalorder %s28, 1
      %p93 = por %p91, %p92
      %p95 = scmp.ne.s32.totalorder %s80, %s94
      %p96 = scmp.eq.s32.totalorder %s28, 0
      %p97 = por %p95, %p96
      %s99 = sadd.s32 %s98, 1
      %p102 = scmp.eq.s32.totalorder %s22, 1
      %p103 = scmp.ne.s32.totalorder %s98, %s100
      %p104 = scmp.eq.s32.totalorder %s22, 0
      %p105 = por %p103, %p104
      %p106 = scmp.ne.s32.totalorder %s98, %s100
      %p107 = scmp.eq.s32.totalorder %s27, 1
      %p108 = por %p106, %p107
      %p109 = scmp.ne.s32.totalorder %s100, %s101
      %p110 = scmp.eq.s32.totalorder %s27, 0
      %p111 = por %p109, %p110
      %p112 = scmp.ne.s32.totalorder %s100, %s101
      %p113 = scmp.eq.s32.totalorder %s28, 1
      %p114 = por %p112, %p113
      %p116 = scmp.ne.s32.totalorder %s101, %s115
      %p117 = scmp.eq.s32.totalorder %s28, 0
      %p118 = por %p116, %p117
      %s120 = sadd.s32 %s119, 1
      %p123 = scmp.eq.s32.totalorder %s22, 1
      %p124 = scmp.ne.s32.totalorder %s119, %s121
      %p125 = scmp.eq.s32.totalorder %s22, 0
      %p126 = por %p124, %p125
      %p127 = scmp.ne.s32.totalorder %s119, %s121
      %p128 = scmp.eq.s32.totalorder %s27, 1
      %p129 = por %p127, %p128
      %p130 = scmp.ne.s32.totalorder %s121, %s122
      %p131 = scmp.eq.s32.totalorder %s27, 0
      %p132 = por %p130, %p131
      %p133 = scmp.ne.s32.totalorder %s121, %s122
      %p134 = scmp.eq.s32.totalorder %s28, 1
      %p135 = por %p133, %p134
      %p137 = scmp.ne.s32.totalorder %s122, %s136
      %p138 = scmp.eq.s32.totalorder %s28, 0
      %p139 = por %p137, %p138
      %s141 = sadd.s32 %s140, 1
      %p144 = scmp.eq.s32.totalorder %s22, 1
      %p145 = scmp.ne.s32.totalorder %s140, %s142
      %p146 = scmp.eq.s32.totalorder %s22, 0
      %p147 = por %p145, %p146
      %p148 = scmp.ne.s32.totalorder %s140, %s142
      %p149 = scmp.eq.s32.totalorder %s27, 1
      %p150 = por %p148, %p149
      %p151 = scmp.ne.s32.totalorder %s142, %s143
      %p152 = scmp.eq.s32.totalorder %s27, 0
      %p153 = por %p151, %p152
      %p154 = scmp.ne.s32.totalorder %s142, %s143
      %p155 = scmp.eq.s32.totalorder %s28, 1
      %p156 = por %p154, %p155
      %p158 = scmp.ne.s32.totalorder %s143, %s157
      %p159 = scmp.eq.s32.totalorder %s28, 0
      %p160 = por %p158, %p159
      %s162 = sadd.s32 %s161, 1
      %p165 = scmp.eq.s32.totalorder %s22, 1
      %p166 = scmp.ne.s32.totalorder %s161, %s163
      %p167 = scmp.eq.s32.totalorder %s22, 0
      %p168 = por %p166, %p167
      %p169 = scmp.ne.s32.totalorder %s161, %s163
      %p170 = scmp.eq.s32.totalorder %s27, 1
      %p171 = por %p169, %p170
      %p172 = scmp.ne.s32.totalorder %s163, %s164
      %p173 = scmp.eq.s32.totalorder %s27, 0
      %p174 = por %p172, %p173
      %p175 = scmp.ne.s32.totalorder %s163, %s164
      %p176 = scmp.eq.s32.totalorder %s28, 1
      %p177 = por %p175, %p176
      %p179 = scmp.ne.s32.totalorder %s164, %s178
      %p180 = scmp.eq.s32.totalorder %s28, 0
      %p181 = por %p179, %p180
      %s183 = sadd.s32 %s182, 1
      %p186 = scmp.eq.s32.totalorder %s22, 1
      %p187 = scmp.ne.s32.totalorder %s182, %s184
      %p188 = scmp.eq.s32.totalorder %s22, 0
      %p189 = por %p187, %p188
      %p190 = scmp.ne.s32.totalorder %s182, %s184
      %p191 = scmp.eq.s32.totalorder %s27, 1
      %p192 = por %p190, %p191
      %p193 = scmp.ne.s32.totalorder %s184, %s185
      %p194 = scmp.eq.s32.totalorder %s27, 0
      %p195 = por %p193, %p194
      %p196 = scmp.ne.s32.totalorder %s184, %s185
      %p197 = scmp.eq.s32.totalorder %s28, 1
      %p198 = por %p196, %p197
      %p200 = scmp.ne.s32.totalorder %s185, %s199
      %p201 = scmp.eq.s32.totalorder %s28, 0
      %p202 = por %p200, %p201
      %s204 = sadd.s32 %s203, 1
      %p207 = scmp.eq.s32.totalorder %s22, 1
      %p208 = scmp.ne.s32.totalorder %s203, %s205
      %p209 = scmp.eq.s32.totalorder %s22, 0
      %p210 = por %p208, %p209
      %p211 = scmp.ne.s32.totalorder %s203, %s205
      %p212 = scmp.eq.s32.totalorder %s27, 1
      %p213 = por %p211, %p212
      %p214 = scmp.ne.s32.totalorder %s205, %s206
      %p215 = scmp.eq.s32.totalorder %s27, 0
      %p216 = por %p214, %p215
      %p217 = scmp.ne.s32.totalorder %s205, %s206
      %p218 = scmp.eq.s32.totalorder %s28, 1
      %p219 = por %p217, %p218
      %p221 = scmp.ne.s32.totalorder %s206, %s220
      %p222 = scmp.eq.s32.totalorder %s28, 0
      %p223 = por %p221, %p222
      %s225 = sadd.s32 %s224, 1
      %p228 = scmp.eq.s32.totalorder %s22, 1
      %p229 = scmp.ne.s32.totalorder %s224, %s226
      %p230 = scmp.eq.s32.totalorder %s22, 0
      %p231 = por %p229, %p230
      %p232 = scmp.ne.s32.totalorder %s224, %s226
      %p233 = scmp.eq.s32.totalorder %s27, 1
      %p234 = por %p232, %p233
      %p235 = scmp.ne.s32.totalorder %s226, %s227
      %p236 = scmp.eq.s32.totalorder %s27, 0
      %p237 = por %p235, %p236
      %p238 = scmp.ne.s32.totalorder %s226, %s227
      %p239 = scmp.eq.s32.totalorder %s28, 1
      %p240 = por %p238, %p239
      %p242 = scmp.ne.s32.totalorder %s227, %s241
      %p243 = scmp.eq.s32.totalorder %s28, 0
      %p244 = por %p242, %p243
      %s246 = sadd.s32 %s245, 1
      %p249 = scmp.eq.s32.totalorder %s22, 1
      %p250 = scmp.ne.s32.totalorder %s245, %s247
      %p251 = scmp.eq.s32.totalorder %s22, 0
      %p252 = por %p250, %p251
      %p253 = scmp.ne.s32.totalorder %s245, %s247
      %p254 = scmp.eq.s32.totalorder %s27, 1
      %p255 = por %p253, %p254
      %p256 = scmp.ne.s32.totalorder %s247, %s248
      %p257 = scmp.eq.s32.totalorder %s27, 0
      %p258 = por %p256, %p257
      %p259 = scmp.ne.s32.totalorder %s247, %s248
      %p260 = scmp.eq.s32.totalorder %s28, 1
      %p261 = por %p259, %p260
      %p263 = scmp.ne.s32.totalorder %s248, %s262
      %p264 = scmp.eq.s32.totalorder %s28, 0
      %p265 = por %p263, %p264
      %s266 = ssub.s32 %s22, %s29
      %p267 = scmp.eq.s32.totalorder %s266, 0
      %s269 = sadd.s32 %s268, 1
      %s270 = scalar_select %p267, %s268, %s269
      %p273 = pneg %p267
      %p274 = scmp.eq.s32.totalorder %s22, 1
      %p275 = por %p273, %p274
      %p276 = scmp.ne.s32.totalorder %s268, %s271
      %p277 = scmp.eq.s32.totalorder %s22, 0
      %p278 = por %p276, %p277
      %p279 = scmp.ne.s32.totalorder %s268, %s271
      %p280 = scmp.eq.s32.totalorder %s27, 1
      %p281 = por %p279, %p280
      %p282 = scmp.ne.s32.totalorder %s271, %s272
      %p283 = scmp.eq.s32.totalorder %s27, 0
      %p284 = por %p282, %p283
      %p285 = scmp.ne.s32.totalorder %s271, %s272
      %p286 = scmp.eq.s32.totalorder %s28, 1
      %p287 = por %p285, %p286
      %p289 = scmp.ne.s32.totalorder %s272, %s288
      %p290 = scmp.eq.s32.totalorder %s28, 0
      %p291 = por %p289, %p290
      %p292 = scmp.le.s32.totalorder 1, %s22
      %p293 = scmp.lt.s32.totalorder %s22, 3
      %p294 = pnand %p292, %p293
      %p295 = pneg %p294
      // Predicated region
      $region9: #{_lambda_.1} parent=5 // pred_check
        _
      $region10: #{_lambda_.1} parent=5 // pred_check_branch
        %297 = sbr.rel (%p294) target = $region12
      $region11: #{_lambda_.1} parent=5 // pred_region
        %s298 = ssub.s32 %s22, 1
        // Predicated region
        $region13: #{_lambda_.1} parent=11 // pred_check
          %p299 = pneg %p69
        $region14: #{_lambda_.1} parent=11 // pred_check_branch
          %301 = sbr.rel (%p299) target = $region16
        $region15: #{_lambda_.1} parent=11 // pred_region
          %s303 = ssub.s32 192, 192
          %304 = vsyncadd [#allocation4], %s303
          %s305 = sshll.u32 [#allocation3], 4
          %s306 = int_to_ptr.vmem [resolvable:$true] %s305
          %311 = dma.hbm_to_vmem [thread:$0]  %s1, 192, %s306, [#allocation4], 64, 64, 4
        $region16: #{_lambda_.1} parent=11 // pred_fallthru
          _
        // Predicated region
        $region17: #{_lambda_.1} parent=11 // pred_check
          %p312 = pneg %p90
        $region18: #{_lambda_.1} parent=11 // pred_check_branch
          %314 = sbr.rel (%p312) target = $region20
        $region19: #{_lambda_.1} parent=11 // pred_region
          _
        $region20: #{_lambda_.1} parent=11 // pred_fallthru
          _
        // Predicated region
        $region21: #{_lambda_.1} parent=11 // pred_check
          %p315 = pneg %p111
        $region22: #{_lambda_.1} parent=11 // pred_check_branch
          %317 = sbr.rel (%p315) target = $region24
        $region23: #{_lambda_.1} parent=11 // pred_region
          _
        $region24: #{_lambda_.1} parent=11 // pred_fallthru
          _
        // Predicated region
        $region25: #{_lambda_.1} parent=11 // pred_check
          %p318 = pneg %p132
        $region26: #{_lambda_.1} parent=11 // pred_check_branch
          %320 = sbr.rel (%p318) target = $region28
        $region27: #{_lambda_.1} parent=11 // pred_region
          _
        $region28: #{_lambda_.1} parent=11 // pred_fallthru
          _
        // Predicated region
        $region29: #{_lambda_.1} parent=11 // pred_check
          %p321 = pneg %p153
        $region30: #{_lambda_.1} parent=11 // pred_check_branch
          %323 = sbr.rel (%p321) target = $region32
        $region31: #{_lambda_.1} parent=11 // pred_region
          %s325 = ssub.s32 512, 512
          %326 = vsyncadd [#allocation7], %s325
          %s327 = sshll.u32 [#allocation6], 4
          %s328 = int_to_ptr.vmem [resolvable:$true] %s327
          %333 = dma.hbm_to_vmem [thread:$0]  %s5, 512, %s328, [#allocation7], 128, 128, 8
        $region32: #{_lambda_.1} parent=11 // pred_fallthru
          _
        // Predicated region
        $region33: #{_lambda_.1} parent=11 // pred_check
          %p334 = pneg %p174
        $region34: #{_lambda_.1} parent=11 // pred_check_branch
          %336 = sbr.rel (%p334) target = $region36
        $region35: #{_lambda_.1} parent=11 // pred_region
          _
        $region36: #{_lambda_.1} parent=11 // pred_fallthru
          _
        // Predicated region
        $region37: #{_lambda_.1} parent=11 // pred_check
          %p337 = pneg %p195
        $region38: #{_lambda_.1} parent=11 // pred_check_branch
          %339 = sbr.rel (%p337) target = $region40
        $region39: #{_lambda_.1} parent=11 // pred_region
          _
        $region40: #{_lambda_.1} parent=11 // pred_fallthru
          _
        // Predicated region
        $region41: #{_lambda_.1} parent=11 // pred_check
          %p340 = pneg %p216
        $region42: #{_lambda_.1} parent=11 // pred_check_branch
          %342 = sbr.rel (%p340) target = $region44
        $region43: #{_lambda_.1} parent=11 // pred_region
          _
        $region44: #{_lambda_.1} parent=11 // pred_fallthru
          _
        // Predicated region
        $region45: #{_lambda_.1} parent=11 // pred_check
          %p343 = pneg %p237
        $region46: #{_lambda_.1} parent=11 // pred_check_branch
          %345 = sbr.rel (%p343) target = $region48
        $region47: #{_lambda_.1} parent=11 // pred_region
          _
        $region48: #{_lambda_.1} parent=11 // pred_fallthru
          _
        // Predicated region
        $region49: #{_lambda_.1} parent=11 // pred_check
          %p346 = pneg %p258
        $region50: #{_lambda_.1} parent=11 // pred_check_branch
          %348 = sbr.rel (%p346) target = $region52
        $region51: #{_lambda_.1} parent=11 // pred_region
          _
        $region52: #{_lambda_.1} parent=11 // pred_fallthru
          _
      $region12: #{_lambda_.1} parent=5 // pred_fallthru
        _
      %p349 = scmp.lt.s32.totalorder %s22, 2
      // Predicated region
      $region53: #{_lambda_.1} parent=5 // pred_check
        %p350 = pneg %p349
      $region54: #{_lambda_.1} parent=5 // pred_check_branch
        %352 = sbr.rel (%p350) target = $region56
      $region55: #{_lambda_.1} parent=5 // pred_region
        // Predicated region
        $region57: #{_lambda_.1} parent=55 // pred_check
          %p353 = pneg %p42
        $region58: #{_lambda_.1} parent=55 // pred_check_branch
          %355 = sbr.rel (%p353) target = $region60
        $region59: #{_lambda_.1} parent=55 // pred_region
          %p356 = scmp.lt.s32.totalorder %s22, 1
          %s357 = scalar_select %p356, %s22, 1
          %s358 = smul.addr %s357, 3
          %s359 = smul.addr %s358, 8
          %s360 = scalar_lea.vmem %s0, %s359
        $region60: #{_lambda_.1} parent=55 // pred_fallthru
          _
      $region56: #{_lambda_.1} parent=5 // pred_fallthru
        _
      %p361 = scmp.le.s32.totalorder 1, %s22
      %p362 = scmp.lt.s32.totalorder %s22, 3
      %p363 = pnand %p361, %p362
      %p364 = pneg %p363
      // Predicated region
      $region61: #{_lambda_.1} parent=5 // pred_check
        _
      $region62: #{_lambda_.1} parent=5 // pred_check_branch
        %366 = sbr.rel (%p363) target = $region64
      $region63: #{_lambda_.1} parent=5 // pred_region
        %s367 = ssub.s32 %s22, 1
        // Predicated region
        $region65: #{_lambda_.1} parent=63 // pred_check
          %p368 = pneg %p69
        $region66: #{_lambda_.1} parent=63 // pred_check_branch
          %370 = sbr.rel (%p368) target = $region68
        $region67: #{_lambda_.1} parent=63 // pred_region
          %371 = dma.done [#allocation4], 192
        $region68: #{_lambda_.1} parent=63 // pred_fallthru
          _
        // Predicated region
        $region69: #{_lambda_.1} parent=63 // pred_check
          %p372 = pneg %p153
        $region70: #{_lambda_.1} parent=63 // pred_check_branch
          %374 = sbr.rel (%p372) target = $region72
        $region71: #{_lambda_.1} parent=63 // pred_region
          %375 = dma.done [#allocation7], 512
        $region72: #{_lambda_.1} parent=63 // pred_fallthru
          _
        %p376 = scmp.lt.s32.totalorder %s27, 1
        %s377 = scalar_select %p376, %s27, 1
        %s378 = smul.addr %s377, 3
        %s379 = smul.addr %s378, 8
        %s380 = scalar_lea.vmem %s0, %s379
        %p381 = pneg %p48
        %p382 = pneg %p45
        %p383 = pneg %p69
        %p384 = pneg %p66
        %p385 = pneg %p90
        %p386 = pneg %p87
        %p387 = pneg %p111
        %p388 = pneg %p108
        %p389 = pneg %p132
        %p390 = pneg %p129
        %p391 = pneg %p153
        %p392 = pneg %p150
        %p393 = pneg %p174
        %p394 = pneg %p171
        %p395 = pneg %p195
        %p396 = pneg %p192
        %p397 = pneg %p216
        %p398 = pneg %p213
        %p399 = pneg %p237
        %p400 = pneg %p234
        %p401 = pneg %p258
        %p402 = pneg %p255
        %p403 = pneg %p284
        %p404 = pneg %p281
        %s405 = sand.u32 %s271, 1
        %s406 = scalar_lea.sflag [#allocation5], %s405
        %s407 = sand.u32 %s271, 1
        %s408 = smul.addr %s407, 4
        %s409 = scalar_lea.vmem [#allocation8], %s408
        %p410 = scmp.lt.s32.totalorder %s27, 1
        %s411 = scalar_select %p410, %s27, 1
        %s412 = smul.addr %s411, 3
        %s413 = smul.addr %s412, 8
        %s414 = scalar_lea.vmem %s0, %s413
        %v415 = vld [vmem:[%s414] ss:$2 sm:$0xff]
        %v416 = vld [vmem:[#allocation3] sm:$0xf]
        %s417 = scalar_lea.vmem %s414, 1
        %v418 = vld [vmem:[%s417] ss:$2 sm:$0xff]
        %s419 = scalar_lea.vmem [#allocation3], 4
        %v420 = vld [vmem:[%s419] sm:$0xf]
        %vm421 = vcmask 31744
        %v423 = vsel %vm421, %v418, 0
        %vm425 = vcmask 1043456
        %v427 = vsel %vm425, %v420, 0
        %429 = vmatprep.subr.mxu0 0.0
        %430 = vmatpush1.msra.mxu0 0.0
        %431 = vmatprep.subr.mxu0 0.0
        %432 = vmatpush1.msra.mxu0 0.0
        %433 = vmatprep.subr.mxu0 0.0
        %434 = vmatpush1.msra.mxu0 0.0
        %435 = vmatprep.subr.mxu0 0.0
        %436 = vmatpush1.msra.mxu0 0.0
        %437 = vmatprep.subr.mxu0 0.0
        %438 = vmatpush1.msra.mxu0 0.0
        %439 = vmatprep.subr.mxu0 0.0
        %440 = vmatpush1.msra.mxu0 0.0
        %441 = vmatprep.subr.mxu0 0.0
        %442 = vmatpush1.msra.mxu0 0.0
        %443 = vmatprep.subr.mxu0 0.0
        %444 = vmatpush1.msra.mxu0 0.0
        %445 = vmatprep.subr.mxu0 0.0
        %446 = vmatpush1.msra.mxu0 0.0
        %447 = vmatprep.subr.mxu0 0.0
        %448 = vmatpush1.msra.mxu0 0.0
        %449 = vmatprep.subr.mxu0 0.0
        %450 = vmatpush1.msra.mxu0 0.0
        %451 = vmatprep.subr.mxu0 0.0
        %452 = vmatpush1.msra.mxu0 0.0
        %453 = vmatprep.subr.mxu0 0.0
        %454 = vmatpush1.msra.mxu0 0.0
        %455 = vmatprep.subr.mxu0 0.0
        %456 = vmatpush1.msra.mxu0 0.0
        %457 = vmatprep.subr.mxu0 0.0
        %458 = vmatpush1.msra.mxu0 0.0
        %459 = vmatprep.subr.mxu0 0.0
        %460 = vmatpush1.msra.mxu0 %v427
        %461 = vmatprep.subr.mxu0 0.0
        %462 = vmatpush2.msra.mxu0 0.0
        %463 = vmatprep.subr.mxu0 0.0
        %464 = vmatpush2.msra.mxu0 0.0
        %465 = vmatprep.subr.mxu0 0.0
        %466 = vmatpush2.msra.mxu0 0.0
        %467 = vmatprep.subr.mxu0 0.0
        %468 = vmatpush2.msra.mxu0 0.0
        %469 = vmatprep.subr.mxu0 0.0
        %470 = vmatpush2.msra.mxu0 0.0
        %471 = vmatprep.subr.mxu0 0.0
        %472 = vmatpush2.msra.mxu0 0.0
        %473 = vmatprep.subr.mxu0 0.0
        %474 = vmatpush2.msra.mxu0 0.0
        %475 = vmatprep.subr.mxu0 0.0
        %476 = vmatpush2.msra.mxu0 0.0
        %477 = vmatprep.subr.mxu0 0.0
        %478 = vmatpush2.msra.mxu0 0.0
        %479 = vmatprep.subr.mxu0 0.0
        %480 = vmatpush2.msra.mxu0 0.0
        %481 = vmatprep.subr.mxu0 0.0
        %482 = vmatpush2.msra.mxu0 0.0
        %483 = vmatprep.subr.mxu0 0.0
        %484 = vmatpush2.msra.mxu0 0.0
        %485 = vmatprep.subr.mxu0 0.0
        %486 = vmatpush2.msra.mxu0 0.0
        %487 = vmatprep.subr.mxu0 0.0
        %488 = vmatpush2.msra.mxu0 0.0
        %489 = vmatprep.subr.mxu0 0.0
        %490 = vmatpush2.msra.mxu0 0.0
        %491 = vmatprep.subr.mxu0 0.0
        %492 = vmatpush2.msra.mxu0 0.0
        %493 = vmatprep.mubr.f32.mxu0 0.0
        %494 = vmatmul.mubr.f32.gmra.mxu0 %v423
        %v495 = vpop.f32.mrf.mxu0
        %v496 = vadd.f32 0.0, %v495
        %v497 = vpop.f32.mrf.mxu0
        %498 = vdwg.mxu0
        %v500 = vsel %vm421, %v415, 0
        %v503 = vsel %vm425, %v416, 0
        %505 = vmatprep.subr.mxu0 0.0
        %506 = vmatpush1.msra.mxu0 0.0
        %507 = vmatprep.subr.mxu0 0.0
        %508 = vmatpush1.msra.mxu0 0.0
        %509 = vmatprep.subr.mxu0 0.0
        %510 = vmatpush1.msra.mxu0 0.0
        %511 = vmatprep.subr.mxu0 0.0
        %512 = vmatpush1.msra.mxu0 0.0
        %513 = vmatprep.subr.mxu0 0.0
        %514 = vmatpush1.msra.mxu0 0.0
        %515 = vmatprep.subr.mxu0 0.0
        %516 = vmatpush1.msra.mxu0 0.0
        %517 = vmatprep.subr.mxu0 0.0
        %518 = vmatpush1.msra.mxu0 0.0
        %519 = vmatprep.subr.mxu0 0.0
        %520 = vmatpush1.msra.mxu0 0.0
        %521 = vmatprep.subr.mxu0 0.0
        %522 = vmatpush1.msra.mxu0 0.0
        %523 = vmatprep.subr.mxu0 0.0
        %524 = vmatpush1.msra.mxu0 0.0
        %525 = vmatprep.subr.mxu0 0.0
        %526 = vmatpush1.msra.mxu0 0.0
        %527 = vmatprep.subr.mxu0 0.0
        %528 = vmatpush1.msra.mxu0 0.0
        %529 = vmatprep.subr.mxu0 0.0
        %530 = vmatpush1.msra.mxu0 0.0
        %531 = vmatprep.subr.mxu0 0.0
        %532 = vmatpush1.msra.mxu0 0.0
        %533 = vmatprep.subr.mxu0 0.0
        %534 = vmatpush1.msra.mxu0 0.0
        %535 = vmatprep.subr.mxu0 0.0
        %536 = vmatpush1.msra.mxu0 %v503
        %537 = vmatprep.subr.mxu0 0.0
        %538 = vmatpush2.msra.mxu0 0.0
        %539 = vmatprep.subr.mxu0 0.0
        %540 = vmatpush2.msra.mxu0 0.0
        %541 = vmatprep.subr.mxu0 0.0
        %542 = vmatpush2.msra.mxu0 0.0
        %543 = vmatprep.subr.mxu0 0.0
        %544 = vmatpush2.msra.mxu0 0.0
        %545 = vmatprep.subr.mxu0 0.0
        %546 = vmatpush2.msra.mxu0 0.0
        %547 = vmatprep.subr.mxu0 0.0
        %548 = vmatpush2.msra.mxu0 0.0
        %549 = vmatprep.subr.mxu0 0.0
        %550 = vmatpush2.msra.mxu0 0.0
        %551 = vmatprep.subr.mxu0 0.0
        %552 = vmatpush2.msra.mxu0 0.0
        %553 = vmatprep.subr.mxu0 0.0
        %554 = vmatpush2.msra.mxu0 0.0
        %555 = vmatprep.subr.mxu0 0.0
        %556 = vmatpush2.msra.mxu0 0.0
        %557 = vmatprep.subr.mxu0 0.0
        %558 = vmatpush2.msra.mxu0 0.0
        %559 = vmatprep.subr.mxu0 0.0
        %560 = vmatpush2.msra.mxu0 0.0
        %561 = vmatprep.subr.mxu0 0.0
        %562 = vmatpush2.msra.mxu0 0.0
        %563 = vmatprep.subr.mxu0 0.0
        %564 = vmatpush2.msra.mxu0 0.0
        %565 = vmatprep.subr.mxu0 0.0
        %566 = vmatpush2.msra.mxu0 0.0
        %567 = vmatprep.subr.mxu0 0.0
        %568 = vmatpush2.msra.mxu0 0.0
        %569 = vmatprep.mubr.f32.mxu0 0.0
        %570 = vmatmul.mubr.f32.gmra.mxu0 %v500
        %v571 = vpop.f32.mrf.mxu0
        %v572 = vadd.f32 %v496, %v571
        %v573 = vpop.f32.mrf.mxu0
        %574 = vdwg.mxu0
        %s575 = scalar_lea.vmem %s414, 2
        %v576 = vld [vmem:[%s575] ss:$2 sm:$0xff]
        %s577 = scalar_lea.vmem [#allocation3], 8
        %v578 = vld [vmem:[%s577] sm:$0xf]
        %v580 = vsel %vm421, %v576, 0
        %v583 = vsel %vm425, %v578, 0
        %585 = vmatprep.subr.mxu0 0.0
        %586 = vmatpush1.msra.mxu0 0.0
        %587 = vmatprep.subr.mxu0 0.0
        %588 = vmatpush1.msra.mxu0 0.0
        %589 = vmatprep.subr.mxu0 0.0
        %590 = vmatpush1.msra.mxu0 0.0
        %591 = vmatprep.subr.mxu0 0.0
        %592 = vmatpush1.msra.mxu0 0.0
        %593 = vmatprep.subr.mxu0 0.0
        %594 = vmatpush1.msra.mxu0 0.0
        %595 = vmatprep.subr.mxu0 0.0
        %596 = vmatpush1.msra.mxu0 0.0
        %597 = vmatprep.subr.mxu0 0.0
        %598 = vmatpush1.msra.mxu0 0.0
        %599 = vmatprep.subr.mxu0 0.0
        %600 = vmatpush1.msra.mxu0 0.0
        %601 = vmatprep.subr.mxu0 0.0
        %602 = vmatpush1.msra.mxu0 0.0
        %603 = vmatprep.subr.mxu0 0.0
        %604 = vmatpush1.msra.mxu0 0.0
        %605 = vmatprep.subr.mxu0 0.0
        %606 = vmatpush1.msra.mxu0 0.0
        %607 = vmatprep.subr.mxu0 0.0
        %608 = vmatpush1.msra.mxu0 0.0
        %609 = vmatprep.subr.mxu0 0.0
        %610 = vmatpush1.msra.mxu0 0.0
        %611 = vmatprep.subr.mxu0 0.0
        %612 = vmatpush1.msra.mxu0 0.0
        %613 = vmatprep.subr.mxu0 0.0
        %614 = vmatpush1.msra.mxu0 0.0
        %615 = vmatprep.subr.mxu0 0.0
        %616 = vmatpush1.msra.mxu0 %v583
        %617 = vmatprep.subr.mxu0 0.0
        %618 = vmatpush2.msra.mxu0 0.0
        %619 = vmatprep.subr.mxu0 0.0
        %620 = vmatpush2.msra.mxu0 0.0
        %621 = vmatprep.subr.mxu0 0.0
        %622 = vmatpush2.msra.mxu0 0.0
        %623 = vmatprep.subr.mxu0 0.0
        %624 = vmatpush2.msra.mxu0 0.0
        %625 = vmatprep.subr.mxu0 0.0
        %626 = vmatpush2.msra.mxu0 0.0
        %627 = vmatprep.subr.mxu0 0.0
        %628 = vmatpush2.msra.mxu0 0.0
        %629 = vmatprep.subr.mxu0 0.0
        %630 = vmatpush2.msra.mxu0 0.0
        %631 = vmatprep.subr.mxu0 0.0
        %632 = vmatpush2.msra.mxu0 0.0
        %633 = vmatprep.subr.mxu0 0.0
        %634 = vmatpush2.msra.mxu0 0.0
        %635 = vmatprep.subr.mxu0 0.0
        %636 = vmatpush2.msra.mxu0 0.0
        %637 = vmatprep.subr.mxu0 0.0
        %638 = vmatpush2.msra.mxu0 0.0
        %639 = vmatprep.subr.mxu0 0.0
        %640 = vmatpush2.msra.mxu0 0.0
        %641 = vmatprep.subr.mxu0 0.0
        %642 = vmatpush2.msra.mxu0 0.0
        %643 = vmatprep.subr.mxu0 0.0
        %644 = vmatpush2.msra.mxu0 0.0
        %645 = vmatprep.subr.mxu0 0.0
        %646 = vmatpush2.msra.mxu0 0.0
        %647 = vmatprep.subr.mxu0 0.0
        %648 = vmatpush2.msra.mxu0 0.0
        %649 = vmatprep.mubr.f32.mxu0 0.0
        %650 = vmatmul.mubr.f32.gmra.mxu0 %v580
        %v651 = vpop.f32.mrf.mxu0
        %v652 = vadd.f32 0.0, %v651
        %v653 = vpop.f32.mrf.mxu0
        %654 = vdwg.mxu0
        %v655 = vadd.f32 %v572, %v652
        %v656 = vld [vmem:[%s2] sm:$0x1]
        %v658 = vlaneseq
        %v659 = vshrl.u32 %v658, 7
        %v660 = vsub.s32 0, %v659
        %v661 = vrot.slane %v656, %v660
        %v663 = vadd.f32 %v655, %v661
        %vm664 = vcmask 261120
        %v665 = vsel %vm664, %v663, 0.0
        %v666 = vrot.slane %v665, 4
        %v667 = vadd.f32 %v665, %v666
        %v668 = vrot.slane %v667, 2
        %v669 = vadd.f32 %v667, %v668
        %v670 = vrot.slane %v669, 1
        %v671 = vadd.f32 %v669, %v670
        %v672 = vld [vmem:[#allocation6] sm:$0xff]
        %v673 = vld [vmem:[#allocation6 + $0x8] sm:$0xff]
        %v674 = vld [vmem:[#allocation6 + $0x10] sm:$0xff]
        %v675 = vld [vmem:[#allocation6 + $0x18] sm:$0xff]
        %v677 = vsel %vm664, %v671, 0
        %679 = vmatprep.subr.mxu0 0.0
        %680 = vmatpush1.msra.mxu0 0.0
        %681 = vmatprep.subr.mxu0 0.0
        %682 = vmatpush1.msra.mxu0 0.0
        %683 = vmatprep.subr.mxu0 0.0
        %684 = vmatpush1.msra.mxu0 0.0
        %685 = vmatprep.subr.mxu0 0.0
        %686 = vmatpush1.msra.mxu0 0.0
        %687 = vmatprep.subr.mxu0 0.0
        %688 = vmatpush1.msra.mxu0 0.0
        %689 = vmatprep.subr.mxu0 0.0
        %690 = vmatpush1.msra.mxu0 0.0
        %691 = vmatprep.subr.mxu0 0.0
        %692 = vmatpush1.msra.mxu0 0.0
        %693 = vmatprep.subr.mxu0 0.0
        %694 = vmatpush1.msra.mxu0 0.0
        %695 = vmatprep.subr.mxu0 0.0
        %696 = vmatpush1.msra.mxu0 0.0
        %697 = vmatprep.subr.mxu0 0.0
        %698 = vmatpush1.msra.mxu0 0.0
        %699 = vmatprep.subr.mxu0 0.0
        %700 = vmatpush1.msra.mxu0 0.0
        %701 = vmatprep.subr.mxu0 0.0
        %702 = vmatpush1.msra.mxu0 0.0
        %703 = vmatprep.subr.mxu0 0.0
        %704 = vmatpush1.msra.mxu0 %v675
        %705 = vmatprep.subr.mxu0 0.0
        %706 = vmatpush1.msra.mxu0 %v674
        %707 = vmatprep.subr.mxu0 0.0
        %708 = vmatpush1.msra.mxu0 %v673
        %709 = vmatprep.subr.mxu0 0.0
        %710 = vmatpush1.msra.mxu0 %v672
        %711 = vmatprep.subr.mxu0 0.0
        %712 = vmatpush2.msra.mxu0 0.0
        %713 = vmatprep.subr.mxu0 0.0
        %714 = vmatpush2.msra.mxu0 0.0
        %715 = vmatprep.subr.mxu0 0.0
        %716 = vmatpush2.msra.mxu0 0.0
        %717 = vmatprep.subr.mxu0 0.0
        %718 = vmatpush2.msra.mxu0 0.0
        %719 = vmatprep.subr.mxu0 0.0
        %720 = vmatpush2.msra.mxu0 0.0
        %721 = vmatprep.subr.mxu0 0.0
        %722 = vmatpush2.msra.mxu0 0.0
        %723 = vmatprep.subr.mxu0 0.0
        %724 = vmatpush2.msra.mxu0 0.0
        %725 = vmatprep.subr.mxu0 0.0
        %726 = vmatpush2.msra.mxu0 0.0
        %727 = vmatprep.subr.mxu0 0.0
        %728 = vmatpush2.msra.mxu0 0.0
        %729 = vmatprep.subr.mxu0 0.0
        %730 = vmatpush2.msra.mxu0 0.0
        %731 = vmatprep.subr.mxu0 0.0
        %732 = vmatpush2.msra.mxu0 0.0
        %733 = vmatprep.subr.mxu0 0.0
        %734 = vmatpush2.msra.mxu0 0.0
        %735 = vmatprep.subr.mxu0 0.0
        %736 = vmatpush2.msra.mxu0 0.0
        %737 = vmatprep.subr.mxu0 0.0
        %738 = vmatpush2.msra.mxu0 0.0
        %739 = vmatprep.subr.mxu0 0.0
        %740 = vmatpush2.msra.mxu0 0.0
        %741 = vmatprep.subr.mxu0 0.0
        %742 = vmatpush2.msra.mxu0 0.0
        %743 = vmatprep.mubr.f32.mxu0 0.0
        %744 = vmatmul.mubr.f32.gmra.mxu0 %v677
        %v745 = vpop.f32.mrf.mxu0
        %v746 = vadd.f32 0.0, %v745
        %v747 = vpop.f32.mrf.mxu0
        %748 = vdwg.mxu0
        %v749 = vlaneseq
        %v750 = vshrl.u32 %v749, 7
        %v751 = vsub.s32 0, %v750
        %v752 = vrot.slane %v746, %v751
        %v753 = vsub.f32 %v663, %v752
        %v754 = vmul.f32 %v753, %v753
        %v755 = vsel %vm664, %v754, 0.0
        %v756 = vrot.slane %v755, 4
        %v757 = vadd.f32 %v755, %v756
        %v758 = vrot.slane %v757, 2
        %v759 = vadd.f32 %v757, %v758
        %v760 = vrot.slane %v759, 1
        %v761 = vadd.f32 %v759, %v760
        %v762 = vld [vmem:[%s3] sm:$0x1]
        %v764 = vsel %vm664, %v761, 0
        %766 = vmatprep.subr.mxu0 0.0
        %767 = vmatpush1.msra.mxu0 0.0
        %768 = vmatprep.subr.mxu0 0.0
        %769 = vmatpush1.msra.mxu0 0.0
        %770 = vmatprep.subr.mxu0 0.0
        %771 = vmatpush1.msra.mxu0 0.0
        %772 = vmatprep.subr.mxu0 0.0
        %773 = vmatpush1.msra.mxu0 0.0
        %774 = vmatprep.subr.mxu0 0.0
        %775 = vmatpush1.msra.mxu0 0.0
        %776 = vmatprep.subr.mxu0 0.0
        %777 = vmatpush1.msra.mxu0 0.0
        %778 = vmatprep.subr.mxu0 0.0
        %779 = vmatpush1.msra.mxu0 0.0
        %780 = vmatprep.subr.mxu0 0.0
        %781 = vmatpush1.msra.mxu0 0.0
        %782 = vmatprep.subr.mxu0 0.0
        %783 = vmatpush1.msra.mxu0 0.0
        %784 = vmatprep.subr.mxu0 0.0
        %785 = vmatpush1.msra.mxu0 0.0
        %786 = vmatprep.subr.mxu0 0.0
        %787 = vmatpush1.msra.mxu0 0.0
        %788 = vmatprep.subr.mxu0 0.0
        %789 = vmatpush1.msra.mxu0 0.0
        %790 = vmatprep.subr.mxu0 0.0
        %791 = vmatpush1.msra.mxu0 %v675
        %792 = vmatprep.subr.mxu0 0.0
        %793 = vmatpush1.msra.mxu0 %v674
        %794 = vmatprep.subr.mxu0 0.0
        %795 = vmatpush1.msra.mxu0 %v673
        %796 = vmatprep.subr.mxu0 0.0
        %797 = vmatpush1.msra.mxu0 %v672
        %798 = vmatprep.subr.mxu0 0.0
        %799 = vmatpush2.msra.mxu0 0.0
        %800 = vmatprep.subr.mxu0 0.0
        %801 = vmatpush2.msra.mxu0 0.0
        %802 = vmatprep.subr.mxu0 0.0
        %803 = vmatpush2.msra.mxu0 0.0
        %804 = vmatprep.subr.mxu0 0.0
        %805 = vmatpush2.msra.mxu0 0.0
        %806 = vmatprep.subr.mxu0 0.0
        %807 = vmatpush2.msra.mxu0 0.0
        %808 = vmatprep.subr.mxu0 0.0
        %809 = vmatpush2.msra.mxu0 0.0
        %810 = vmatprep.subr.mxu0 0.0
        %811 = vmatpush2.msra.mxu0 0.0
        %812 = vmatprep.subr.mxu0 0.0
        %813 = vmatpush2.msra.mxu0 0.0
        %814 = vmatprep.subr.mxu0 0.0
        %815 = vmatpush2.msra.mxu0 0.0
        %816 = vmatprep.subr.mxu0 0.0
        %817 = vmatpush2.msra.mxu0 0.0
        %818 = vmatprep.subr.mxu0 0.0
        %819 = vmatpush2.msra.mxu0 0.0
        %820 = vmatprep.subr.mxu0 0.0
        %821 = vmatpush2.msra.mxu0 0.0
        %822 = vmatprep.subr.mxu0 0.0
        %823 = vmatpush2.msra.mxu0 0.0
        %824 = vmatprep.subr.mxu0 0.0
        %825 = vmatpush2.msra.mxu0 0.0
        %826 = vmatprep.subr.mxu0 0.0
        %827 = vmatpush2.msra.mxu0 0.0
        %828 = vmatprep.subr.mxu0 0.0
        %829 = vmatpush2.msra.mxu0 0.0
        %830 = vmatprep.mubr.f32.mxu0 0.0
        %831 = vmatmul.mubr.f32.gmra.mxu0 %v764
        %v832 = vpop.f32.mrf.mxu0
        %v833 = vadd.f32 1e-05, %v832
        %v834 = vpop.f32.mrf.mxu0
        %835 = vdwg.mxu0
        %v836 = vrsqrt.pop %v833
        %v837 = vmul.f32 %v762, %v836
        %v839 = vlaneseq
        %v840 = vshrl.u32 %v839, 7
        %v841 = vsub.s32 0, %v840
        %v842 = vrot.slane %v837, %v841
        %v844 = vmul.f32 %v753, %v842
        %v845 = vld [vmem:[%s4] sm:$0x1]
        %v847 = vlaneseq
        %v848 = vshrl.u32 %v847, 7
        %v849 = vsub.s32 0, %v848
        %v850 = vrot.slane %v845, %v849
        %v852 = vadd.f32 %v844, %v850
        %v853 = vmul.f32 %v852, 0.5
        %v854 = vmul.f32 %v852, 0.044715
        %v855 = vmul.f32 %v854, %v852
        %v856 = vmul.f32 %v855, %v852
        %v857 = vadd.f32 %v852, %v856
        %v858 = vmul.f32 %v857, 0.7978846
        %v859 = vtanh.pop %v858
        %v860 = vadd.f32 %v859, 1.0
        %v861 = vmul.f32 %v853, %v860
        %vm862 = vcmask 253952
        %863 = vst.msk [vmem:[#allocation2] sm:$0x1] %vm862, 0.0
        %864 = vst.msk [vmem:[#allocation2 + $0x9] sm:$0x1] %vm862, 0.0
        %865 = vst.msk [vmem:[#allocation2 + $0x1] sm:$0xff] %vm664, %v861
        %v866 = vld [vmem:[#allocation2] ss:$2 sm:$0xf]
        %v867 = vld [vmem:[%s6] sm:$0xff]
        %v868 = vld [vmem:[%s6 + $0x8] sm:$0xff]
        %v869 = vld [vmem:[%s6 + $0x10] sm:$0xff]
        %v870 = vld [vmem:[%s6 + $0x18] sm:$0xff]
        %s871 = scalar_lea.vmem [#allocation2], 1
        %v872 = vld [vmem:[%s871] ss:$2 sm:$0xf]
        %s873 = scalar_lea.vmem %s6, 32
        %v874 = vld [vmem:[%s873] sm:$0xff]
        %v875 = vld [vmem:[%s873 + $0x8] sm:$0xff]
        %v876 = vld [vmem:[%s873 + $0x10] sm:$0xff]
        %v877 = vld [vmem:[%s873 + $0x18] sm:$0xff]
        %v879 = vsel %vm664, %v872, 0
        %881 = vmatprep.subr.mxu0 0.0
        %882 = vmatpush1.msra.mxu0 0.0
        %883 = vmatprep.subr.mxu0 0.0
        %884 = vmatpush1.msra.mxu0 0.0
        %885 = vmatprep.subr.mxu0 0.0
        %886 = vmatpush1.msra.mxu0 0.0
        %887 = vmatprep.subr.mxu0 0.0
        %888 = vmatpush1.msra.mxu0 0.0
        %889 = vmatprep.subr.mxu0 0.0
        %890 = vmatpush1.msra.mxu0 0.0
        %891 = vmatprep.subr.mxu0 0.0
        %892 = vmatpush1.msra.mxu0 0.0
        %893 = vmatprep.subr.mxu0 0.0
        %894 = vmatpush1.msra.mxu0 0.0
        %895 = vmatprep.subr.mxu0 0.0
        %896 = vmatpush1.msra.mxu0 0.0
        %897 = vmatprep.subr.mxu0 0.0
        %898 = vmatpush1.msra.mxu0 0.0
        %899 = vmatprep.subr.mxu0 0.0
        %900 = vmatpush1.msra.mxu0 0.0
        %901 = vmatprep.subr.mxu0 0.0
        %902 = vmatpush1.msra.mxu0 0.0
        %903 = vmatprep.subr.mxu0 0.0
        %904 = vmatpush1.msra.mxu0 0.0
        %905 = vmatprep.subr.mxu0 0.0
        %906 = vmatpush1.msra.mxu0 %v877
        %907 = vmatprep.subr.mxu0 0.0
        %908 = vmatpush1.msra.mxu0 %v876
        %909 = vmatprep.subr.mxu0 0.0
        %910 = vmatpush1.msra.mxu0 %v875
        %911 = vmatprep.subr.mxu0 0.0
        %912 = vmatpush1.msra.mxu0 %v874
        %913 = vmatprep.subr.mxu0 0.0
        %914 = vmatpush2.msra.mxu0 0.0
        %915 = vmatprep.subr.mxu0 0.0
        %916 = vmatpush2.msra.mxu0 0.0
        %917 = vmatprep.subr.mxu0 0.0
        %918 = vmatpush2.msra.mxu0 0.0
        %919 = vmatprep.subr.mxu0 0.0
        %920 = vmatpush2.msra.mxu0 0.0
        %921 = vmatprep.subr.mxu0 0.0
        %922 = vmatpush2.msra.mxu0 0.0
        %923 = vmatprep.subr.mxu0 0.0
        %924 = vmatpush2.msra.mxu0 0.0
        %925 = vmatprep.subr.mxu0 0.0
        %926 = vmatpush2.msra.mxu0 0.0
        %927 = vmatprep.subr.mxu0 0.0
        %928 = vmatpush2.msra.mxu0 0.0
        %929 = vmatprep.subr.mxu0 0.0
        %930 = vmatpush2.msra.mxu0 0.0
        %931 = vmatprep.subr.mxu0 0.0
        %932 = vmatpush2.msra.mxu0 0.0
        %933 = vmatprep.subr.mxu0 0.0
        %934 = vmatpush2.msra.mxu0 0.0
        %935 = vmatprep.subr.mxu0 0.0
        %936 = vmatpush2.msra.mxu0 0.0
        %937 = vmatprep.subr.mxu0 0.0
        %938 = vmatpush2.msra.mxu0 0.0
        %939 = vmatprep.subr.mxu0 0.0
        %940 = vmatpush2.msra.mxu0 0.0
        %941 = vmatprep.subr.mxu0 0.0
        %942 = vmatpush2.msra.mxu0 0.0
        %943 = vmatprep.subr.mxu0 0.0
        %944 = vmatpush2.msra.mxu0 0.0
        %945 = vmatprep.mubr.f32.mxu0 0.0
        %946 = vmatmul.mubr.f32.gmra.mxu0 %v879
        %v947 = vpop.f32.mrf.mxu0
        %v948 = vadd.f32 0.0, %v947
        %v949 = vpop.f32.mrf.mxu0
        %950 = vdwg.mxu0
        %v952 = vsel %vm664, %v866, 0
        %954 = vmatprep.subr.mxu0 0.0
        %955 = vmatpush1.msra.mxu0 0.0
        %956 = vmatprep.subr.mxu0 0.0
        %957 = vmatpush1.msra.mxu0 0.0
        %958 = vmatprep.subr.mxu0 0.0
        %959 = vmatpush1.msra.mxu0 0.0
        %960 = vmatprep.subr.mxu0 0.0
        %961 = vmatpush1.msra.mxu0 0.0
        %962 = vmatprep.subr.mxu0 0.0
        %963 = vmatpush1.msra.mxu0 0.0
        %964 = vmatprep.subr.mxu0 0.0
        %965 = vmatpush1.msra.mxu0 0.0
        %966 = vmatprep.subr.mxu0 0.0
        %967 = vmatpush1.msra.mxu0 0.0
        %968 = vmatprep.subr.mxu0 0.0
        %969 = vmatpush1.msra.mxu0 0.0
        %970 = vmatprep.subr.mxu0 0.0
        %971 = vmatpush1.msra.mxu0 0.0
        %972 = vmatprep.subr.mxu0 0.0
        %973 = vmatpush1.msra.mxu0 0.0
        %974 = vmatprep.subr.mxu0 0.0
        %975 = vmatpush1.msra.mxu0 0.0
        %976 = vmatprep.subr.mxu0 0.0
        %977 = vmatpush1.msra.mxu0 0.0
        %978 = vmatprep.subr.mxu0 0.0
        %979 = vmatpush1.msra.mxu0 %v870
        %980 = vmatprep.subr.mxu0 0.0
        %981 = vmatpush1.msra.mxu0 %v869
        %982 = vmatprep.subr.mxu0 0.0
        %983 = vmatpush1.msra.mxu0 %v868
        %984 = vmatprep.subr.mxu0 0.0
        %985 = vmatpush1.msra.mxu0 %v867
        %986 = vmatprep.subr.mxu0 0.0
        %987 = vmatpush2.msra.mxu0 0.0
        %988 = vmatprep.subr.mxu0 0.0
        %989 = vmatpush2.msra.mxu0 0.0
        %990 = vmatprep.subr.mxu0 0.0
        %991 = vmatpush2.msra.mxu0 0.0
        %992 = vmatprep.subr.mxu0 0.0
        %993 = vmatpush2.msra.mxu0 0.0
        %994 = vmatprep.subr.mxu0 0.0
        %995 = vmatpush2.msra.mxu0 0.0
        %996 = vmatprep.subr.mxu0 0.0
        %997 = vmatpush2.msra.mxu0 0.0
        %998 = vmatprep.subr.mxu0 0.0
        %999 = vmatpush2.msra.mxu0 0.0
        %1000 = vmatprep.subr.mxu0 0.0
        %1001 = vmatpush2.msra.mxu0 0.0
        %1002 = vmatprep.subr.mxu0 0.0
        %1003 = vmatpush2.msra.mxu0 0.0
        %1004 = vmatprep.subr.mxu0 0.0
        %1005 = vmatpush2.msra.mxu0 0.0
        %1006 = vmatprep.subr.mxu0 0.0
        %1007 = vmatpush2.msra.mxu0 0.0
        %1008 = vmatprep.subr.mxu0 0.0
        %1009 = vmatpush2.msra.mxu0 0.0
        %1010 = vmatprep.subr.mxu0 0.0
        %1011 = vmatpush2.msra.mxu0 0.0
        %1012 = vmatprep.subr.mxu0 0.0
        %1013 = vmatpush2.msra.mxu0 0.0
        %1014 = vmatprep.subr.mxu0 0.0
        %1015 = vmatpush2.msra.mxu0 0.0
        %1016 = vmatprep.subr.mxu0 0.0
        %1017 = vmatpush2.msra.mxu0 0.0
        %1018 = vmatprep.mubr.f32.mxu0 0.0
        %1019 = vmatmul.mubr.f32.gmra.mxu0 %v952
        %v1020 = vpop.f32.mrf.mxu0
        %v1021 = vadd.f32 %v948, %v1020
        %v1022 = vpop.f32.mrf.mxu0
        %1023 = vdwg.mxu0
        %s1024 = scalar_lea.vmem [#allocation2], 2
        %v1025 = vld [vmem:[%s1024] ss:$2 sm:$0xf]
        %s1026 = scalar_lea.vmem %s6, 64
        %v1027 = vld [vmem:[%s1026] sm:$0xff]
        %v1028 = vld [vmem:[%s1026 + $0x8] sm:$0xff]
        %v1029 = vld [vmem:[%s1026 + $0x10] sm:$0xff]
        %v1030 = vld [vmem:[%s1026 + $0x18] sm:$0xff]
        %v1032 = vsel %vm664, %v1025, 0
        %1034 = vmatprep.subr.mxu0 0.0
        %1035 = vmatpush1.msra.mxu0 0.0
        %1036 = vmatprep.subr.mxu0 0.0
        %1037 = vmatpush1.msra.mxu0 0.0
        %1038 = vmatprep.subr.mxu0 0.0
        %1039 = vmatpush1.msra.mxu0 0.0
        %1040 = vmatprep.subr.mxu0 0.0
        %1041 = vmatpush1.msra.mxu0 0.0
        %1042 = vmatprep.subr.mxu0 0.0
        %1043 = vmatpush1.msra.mxu0 0.0
        %1044 = vmatprep.subr.mxu0 0.0
        %1045 = vmatpush1.msra.mxu0 0.0
        %1046 = vmatprep.subr.mxu0 0.0
        %1047 = vmatpush1.msra.mxu0 0.0
        %1048 = vmatprep.subr.mxu0 0.0
        %1049 = vmatpush1.msra.mxu0 0.0
        %1050 = vmatprep.subr.mxu0 0.0
        %1051 = vmatpush1.msra.mxu0 0.0
        %1052 = vmatprep.subr.mxu0 0.0
        %1053 = vmatpush1.msra.mxu0 0.0
        %1054 = vmatprep.subr.mxu0 0.0
        %1055 = vmatpush1.msra.mxu0 0.0
        %1056 = vmatprep.subr.mxu0 0.0
        %1057 = vmatpush1.msra.mxu0 0.0
        %1058 = vmatprep.subr.mxu0 0.0
        %1059 = vmatpush1.msra.mxu0 %v1030
        %1060 = vmatprep.subr.mxu0 0.0
        %1061 = vmatpush1.msra.mxu0 %v1029
        %1062 = vmatprep.subr.mxu0 0.0
        %1063 = vmatpush1.msra.mxu0 %v1028
        %1064 = vmatprep.subr.mxu0 0.0
        %1065 = vmatpush1.msra.mxu0 %v1027
        %1066 = vmatprep.subr.mxu0 0.0
        %1067 = vmatpush2.msra.mxu0 0.0
        %1068 = vmatprep.subr.mxu0 0.0
        %1069 = vmatpush2.msra.mxu0 0.0
        %1070 = vmatprep.subr.mxu0 0.0
        %1071 = vmatpush2.msra.mxu0 0.0
        %1072 = vmatprep.subr.mxu0 0.0
        %1073 = vmatpush2.msra.mxu0 0.0
        %1074 = vmatprep.subr.mxu0 0.0
        %1075 = vmatpush2.msra.mxu0 0.0
        %1076 = vmatprep.subr.mxu0 0.0
        %1077 = vmatpush2.msra.mxu0 0.0
        %1078 = vmatprep.subr.mxu0 0.0
        %1079 = vmatpush2.msra.mxu0 0.0
        %1080 = vmatprep.subr.mxu0 0.0
        %1081 = vmatpush2.msra.mxu0 0.0
        %1082 = vmatprep.subr.mxu0 0.0
        %1083 = vmatpush2.msra.mxu0 0.0
        %1084 = vmatprep.subr.mxu0 0.0
        %1085 = vmatpush2.msra.mxu0 0.0
        %1086 = vmatprep.subr.mxu0 0.0
        %1087 = vmatpush2.msra.mxu0 0.0
        %1088 = vmatprep.subr.mxu0 0.0
        %1089 = vmatpush2.msra.mxu0 0.0
        %1090 = vmatprep.subr.mxu0 0.0
        %1091 = vmatpush2.msra.mxu0 0.0
        %1092 = vmatprep.subr.mxu0 0.0
        %1093 = vmatpush2.msra.mxu0 0.0
        %1094 = vmatprep.subr.mxu0 0.0
        %1095 = vmatpush2.msra.mxu0 0.0
        %1096 = vmatprep.subr.mxu0 0.0
        %1097 = vmatpush2.msra.mxu0 0.0
        %1098 = vmatprep.mubr.f32.mxu0 0.0
        %1099 = vmatmul.mubr.f32.gmra.mxu0 %v1032
        %v1100 = vpop.f32.mrf.mxu0
        %v1101 = vadd.f32 0.0, %v1100
        %v1102 = vpop.f32.mrf.mxu0
        %1103 = vdwg.mxu0
        %v1104 = vadd.f32 %v1021, %v1101
        %v1105 = vld [vmem:[%s7] sm:$0x1]
        %v1107 = vlaneseq
        %v1108 = vshrl.u32 %v1107, 7
        %v1109 = vsub.s32 0, %v1108
        %v1110 = vrot.slane %v1105, %v1109
        %v1112 = vadd.f32 %v1104, %v1110
        %vm1113 = vcmask 257024
        %v1114 = vsel %vm1113, %v1112, 0.0
        %v1115 = vrot.slane %v1114, 4
        %v1116 = vadd.f32 %v1114, %v1115
        %v1117 = vrot.slane %v1116, 2
        %v1118 = vadd.f32 %v1116, %v1117
        %v1119 = vrot.slane %v1118, 1
        %v1120 = vadd.f32 %v1118, %v1119
        %v1121 = vld [vmem:[%s10] sm:$0xff]
        %v1122 = vld [vmem:[%s10 + $0x8] sm:$0xff]
        %v1123 = vld [vmem:[%s10 + $0x10] sm:$0xff]
        %v1124 = vld [vmem:[%s10 + $0x18] sm:$0xff]
        %v1126 = vsel %vm664, %v1120, 0
        %1128 = vmatprep.subr.mxu0 0.0
        %1129 = vmatpush1.msra.mxu0 0.0
        %1130 = vmatprep.subr.mxu0 0.0
        %1131 = vmatpush1.msra.mxu0 0.0
        %1132 = vmatprep.subr.mxu0 0.0
        %1133 = vmatpush1.msra.mxu0 0.0
        %1134 = vmatprep.subr.mxu0 0.0
        %1135 = vmatpush1.msra.mxu0 0.0
        %1136 = vmatprep.subr.mxu0 0.0
        %1137 = vmatpush1.msra.mxu0 0.0
        %1138 = vmatprep.subr.mxu0 0.0
        %1139 = vmatpush1.msra.mxu0 0.0
        %1140 = vmatprep.subr.mxu0 0.0
        %1141 = vmatpush1.msra.mxu0 0.0
        %1142 = vmatprep.subr.mxu0 0.0
        %1143 = vmatpush1.msra.mxu0 0.0
        %1144 = vmatprep.subr.mxu0 0.0
        %1145 = vmatpush1.msra.mxu0 0.0
        %1146 = vmatprep.subr.mxu0 0.0
        %1147 = vmatpush1.msra.mxu0 0.0
        %1148 = vmatprep.subr.mxu0 0.0
        %1149 = vmatpush1.msra.mxu0 0.0
        %1150 = vmatprep.subr.mxu0 0.0
        %1151 = vmatpush1.msra.mxu0 0.0
        %1152 = vmatprep.subr.mxu0 0.0
        %1153 = vmatpush1.msra.mxu0 %v1124
        %1154 = vmatprep.subr.mxu0 0.0
        %1155 = vmatpush1.msra.mxu0 %v1123
        %1156 = vmatprep.subr.mxu0 0.0
        %1157 = vmatpush1.msra.mxu0 %v1122
        %1158 = vmatprep.subr.mxu0 0.0
        %1159 = vmatpush1.msra.mxu0 %v1121
        %1160 = vmatprep.subr.mxu0 0.0
        %1161 = vmatpush2.msra.mxu0 0.0
        %1162 = vmatprep.subr.mxu0 0.0
        %1163 = vmatpush2.msra.mxu0 0.0
        %1164 = vmatprep.subr.mxu0 0.0
        %1165 = vmatpush2.msra.mxu0 0.0
        %1166 = vmatprep.subr.mxu0 0.0
        %1167 = vmatpush2.msra.mxu0 0.0
        %1168 = vmatprep.subr.mxu0 0.0
        %1169 = vmatpush2.msra.mxu0 0.0
        %1170 = vmatprep.subr.mxu0 0.0
        %1171 = vmatpush2.msra.mxu0 0.0
        %1172 = vmatprep.subr.mxu0 0.0
        %1173 = vmatpush2.msra.mxu0 0.0
        %1174 = vmatprep.subr.mxu0 0.0
        %1175 = vmatpush2.msra.mxu0 0.0
        %1176 = vmatprep.subr.mxu0 0.0
        %1177 = vmatpush2.msra.mxu0 0.0
        %1178 = vmatprep.subr.mxu0 0.0
        %1179 = vmatpush2.msra.mxu0 0.0
        %1180 = vmatprep.subr.mxu0 0.0
        %1181 = vmatpush2.msra.mxu0 0.0
        %1182 = vmatprep.subr.mxu0 0.0
        %1183 = vmatpush2.msra.mxu0 0.0
        %1184 = vmatprep.subr.mxu0 0.0
        %1185 = vmatpush2.msra.mxu0 0.0
        %1186 = vmatprep.subr.mxu0 0.0
        %1187 = vmatpush2.msra.mxu0 0.0
        %1188 = vmatprep.subr.mxu0 0.0
        %1189 = vmatpush2.msra.mxu0 0.0
        %1190 = vmatprep.subr.mxu0 0.0
        %1191 = vmatpush2.msra.mxu0 0.0
        %1192 = vmatprep.mubr.f32.mxu0 0.0
        %1193 = vmatmul.mubr.f32.gmra.mxu0 %v1126
        %v1194 = vpop.f32.mrf.mxu0
        %v1195 = vadd.f32 0.0, %v1194
        %v1196 = vpop.f32.mrf.mxu0
        %1197 = vdwg.mxu0
        %v1198 = vlaneseq
        %v1199 = vshrl.u32 %v1198, 7
        %v1200 = vsub.s32 0, %v1199
        %v1201 = vrot.slane %v1195, %v1200
        %v1202 = vsub.f32 %v1112, %v1201
        %v1203 = vmul.f32 %v1202, %v1202
        %v1204 = vsel %vm1113, %v1203, 0.0
        %v1205 = vrot.slane %v1204, 4
        %v1206 = vadd.f32 %v1204, %v1205
        %v1207 = vrot.slane %v1206, 2
        %v1208 = vadd.f32 %v1206, %v1207
        %v1209 = vrot.slane %v1208, 1
        %v1210 = vadd.f32 %v1208, %v1209
        %v1211 = vld [vmem:[%s8] sm:$0x1]
        %v1213 = vsel %vm664, %v1210, 0
        %1215 = vmatprep.subr.mxu0 0.0
        %1216 = vmatpush1.msra.mxu0 0.0
        %1217 = vmatprep.subr.mxu0 0.0
        %1218 = vmatpush1.msra.mxu0 0.0
        %1219 = vmatprep.subr.mxu0 0.0
        %1220 = vmatpush1.msra.mxu0 0.0
        %1221 = vmatprep.subr.mxu0 0.0
        %1222 = vmatpush1.msra.mxu0 0.0
        %1223 = vmatprep.subr.mxu0 0.0
        %1224 = vmatpush1.msra.mxu0 0.0
        %1225 = vmatprep.subr.mxu0 0.0
        %1226 = vmatpush1.msra.mxu0 0.0
        %1227 = vmatprep.subr.mxu0 0.0
        %1228 = vmatpush1.msra.mxu0 0.0
        %1229 = vmatprep.subr.mxu0 0.0
        %1230 = vmatpush1.msra.mxu0 0.0
        %1231 = vmatprep.subr.mxu0 0.0
        %1232 = vmatpush1.msra.mxu0 0.0
        %1233 = vmatprep.subr.mxu0 0.0
        %1234 = vmatpush1.msra.mxu0 0.0
        %1235 = vmatprep.subr.mxu0 0.0
        %1236 = vmatpush1.msra.mxu0 0.0
        %1237 = vmatprep.subr.mxu0 0.0
        %1238 = vmatpush1.msra.mxu0 0.0
        %1239 = vmatprep.subr.mxu0 0.0
        %1240 = vmatpush1.msra.mxu0 %v1124
        %1241 = vmatprep.subr.mxu0 0.0
        %1242 = vmatpush1.msra.mxu0 %v1123
        %1243 = vmatprep.subr.mxu0 0.0
        %1244 = vmatpush1.msra.mxu0 %v1122
        %1245 = vmatprep.subr.mxu0 0.0
        %1246 = vmatpush1.msra.mxu0 %v1121
        %1247 = vmatprep.subr.mxu0 0.0
        %1248 = vmatpush2.msra.mxu0 0.0
        %1249 = vmatprep.subr.mxu0 0.0
        %1250 = vmatpush2.msra.mxu0 0.0
        %1251 = vmatprep.subr.mxu0 0.0
        %1252 = vmatpush2.msra.mxu0 0.0
        %1253 = vmatprep.subr.mxu0 0.0
        %1254 = vmatpush2.msra.mxu0 0.0
        %1255 = vmatprep.subr.mxu0 0.0
        %1256 = vmatpush2.msra.mxu0 0.0
        %1257 = vmatprep.subr.mxu0 0.0
        %1258 = vmatpush2.msra.mxu0 0.0
        %1259 = vmatprep.subr.mxu0 0.0
        %1260 = vmatpush2.msra.mxu0 0.0
        %1261 = vmatprep.subr.mxu0 0.0
        %1262 = vmatpush2.msra.mxu0 0.0
        %1263 = vmatprep.subr.mxu0 0.0
        %1264 = vmatpush2.msra.mxu0 0.0
        %1265 = vmatprep.subr.mxu0 0.0
        %1266 = vmatpush2.msra.mxu0 0.0
        %1267 = vmatprep.subr.mxu0 0.0
        %1268 = vmatpush2.msra.mxu0 0.0
        %1269 = vmatprep.subr.mxu0 0.0
        %1270 = vmatpush2.msra.mxu0 0.0
        %1271 = vmatprep.subr.mxu0 0.0
        %1272 = vmatpush2.msra.mxu0 0.0
        %1273 = vmatprep.subr.mxu0 0.0
        %1274 = vmatpush2.msra.mxu0 0.0
        %1275 = vmatprep.subr.mxu0 0.0
        %1276 = vmatpush2.msra.mxu0 0.0
        %1277 = vmatprep.subr.mxu0 0.0
        %1278 = vmatpush2.msra.mxu0 0.0
        %1279 = vmatprep.mubr.f32.mxu0 0.0
        %1280 = vmatmul.mubr.f32.gmra.mxu0 %v1213
        %v1281 = vpop.f32.mrf.mxu0
        %v1282 = vadd.f32 1e-05, %v1281
        %v1283 = vpop.f32.mrf.mxu0
        %1284 = vdwg.mxu0
        %v1285 = vrsqrt.pop %v1282
        %v1286 = vmul.f32 %v1211, %v1285
        %v1288 = vlaneseq
        %v1289 = vshrl.u32 %v1288, 7
        %v1290 = vsub.s32 0, %v1289
        %v1291 = vrot.slane %v1286, %v1290
        %v1293 = vmul.f32 %v1202, %v1291
        %v1294 = vld [vmem:[%s9] sm:$0x1]
        %v1296 = vlaneseq
        %v1297 = vshrl.u32 %v1296, 7
        %v1298 = vsub.s32 0, %v1297
        %v1299 = vrot.slane %v1294, %v1298
        %v1301 = vadd.f32 %v1293, %v1299
        %v1302 = vmul.f32 %v1301, 0.5
        %v1303 = vmul.f32 %v1301, 0.044715
        %v1304 = vmul.f32 %v1303, %v1301
        %v1305 = vmul.f32 %v1304, %v1301
        %v1306 = vadd.f32 %v1301, %v1305
        %v1307 = vmul.f32 %v1306, 0.7978846
        %v1308 = vtanh.pop %v1307
        %v1309 = vadd.f32 %v1308, 1.0
        %v1310 = vmul.f32 %v1302, %v1309
        %1311 = vst.msk [vmem:[%s409] sm:$0xf] %vm1113, %v1310
        %s1312 = sand.u32 %s271, 1
        %s1313 = scalar_lea.sflag [#allocation5], %s1312
        %s1314 = sand.u32 %s271, 1
        %s1315 = smul.addr %s1314, 4
        %s1316 = scalar_lea.vmem [#allocation8], %s1315
        // Predicated region
        $region73: #{_lambda_.1} parent=63 // pred_check
          %p1317 = pneg %p281
        $region74: #{_lambda_.1} parent=63 // pred_check_branch
          %1319 = sbr.rel (%p1317) target = $region76
        $region75: #{_lambda_.1} parent=63 // pred_region
          %s1321 = ssub.s32 64, 64
          %1322 = vsyncadd %s1313, %s1321
          %s1323 = smul.addr %s27, 64
          %s1324 = scalar_lea.hbm %s11, %s1323
          %s1326 = sshll.u32 %s1316, 4
          %s1327 = int_to_ptr.vmem [resolvable:$true] %s1326
          %1329 = dma.vmem_to_hbm [thread:$0]  %s1327, 64, %s1324, %s1313
        $region76: #{_lambda_.1} parent=63 // pred_fallthru
          _
      $region64: #{_lambda_.1} parent=5 // pred_fallthru
        _
      %p1330 = scmp.le.s32.totalorder 2, %s22
      // Predicated region
      $region77: #{_lambda_.1} parent=5 // pred_check
        %p1331 = pneg %p1330
      $region78: #{_lambda_.1} parent=5 // pred_check_branch
        %1333 = sbr.rel (%p1331) target = $region80
      $region79: #{_lambda_.1} parent=5 // pred_region
        %s1334 = ssub.s32 %s22, 2
        // Predicated region
        $region81: #{_lambda_.1} parent=79 // pred_check
          %p1335 = pneg %p287
        $region82: #{_lambda_.1} parent=79 // pred_check_branch
          %1337 = sbr.rel (%p1335) target = $region84
        $region83: #{_lambda_.1} parent=79 // pred_region
          %s1338 = sand.u32 %s272, 1
          %s1339 = scalar_lea.sflag [#allocation5], %s1338
          %s1340 = sand.u32 %s272, 1
          %s1341 = smul.addr %s1340, 4
          %s1342 = scalar_lea.vmem [#allocation8], %s1341
          %1343 = dma.done %s1339, 64
        $region84: #{_lambda_.1} parent=79 // pred_fallthru
          _
      $region80: #{_lambda_.1} parent=5 // pred_fallthru
        _
    $region6: #{_lambda_.1} parent=1 // loop_footer
      %s26 = sadd.s32 1, %s22
    $region7: #{_lambda_.1} parent=1 // loop_footer_branch
      %21 = sbr.rel target = $region3
    $region8: #{_lambda_.1} parent=1 // loop_exit
      _
    %1344 = vsyncpa [#allocation4], 1
    %s1345 = scalar_lea.sflag [#allocation4], 1
    %1346 = vsyncpa %s1345, 1
    %1347 = vsyncpa [#allocation7], 1
    %1348 = vsyncpa [#allocation5], 1
    %s1349 = scalar_lea.sflag [#allocation5], 1
    %1350 = vsyncpa %s1349, 1

</llo_original>
